<compile_context>
chip_gen: v7x
topology: tpu7x:2x2x1
jax: 0.10.0
libtpu: 0.0.40
codegen_flags: <defaults>
</compile_context>

<pallas_src>
import functools

import jax
import jax.numpy as jnp
from jax.experimental import pallas as pl
from jax.experimental.pallas import tpu as pltpu


def _gru_chunk_kernel(gi_ref, whh_ref, bhh_ref, out_ref, h_ref, *,
                      hidden_size, chunk):
    """One grid step == `chunk` GRU timesteps (PyTorch gate order r, z, n).

    gi_ref : (Bt, T, 3H) f32   precomputed input projection (x @ W_ih^T + b_ih)
    whh_ref: (H, 3H)     matmul dtype (bf16 or f32)
    bhh_ref: (1, 3H)     f32
    out_ref: (Bt, T, H)  f32   all hidden states of this chunk
    h_ref  : (Bt, H)     f32   carried hidden state (VMEM scratch, persists over chunks)
    """
    # h_0 = zeros at the start of every batch tile's time sweep (time axis is inner).
    @pl.when(pl.program_id(1) == 0)
    def _():
        h_ref[...] = jnp.zeros_like(h_ref)

    H = hidden_size
    whh = whh_ref[...]          # (H, 3H)  - grid-invariant, stays in VMEM
    bhh = bhh_ref[...]          # (1, 3H)  f32
    h = h_ref[...]              # (Bt, H)  f32

    # Static unroll over the chunk: gives the scheduler visibility across timesteps
    # (gh matmul of step t+1 can overlap the EUP/store work of step t).
    for t in range(chunk):
        gi_t = gi_ref[:, t, :]  # (Bt, 3H) f32 -- input projection hoisted out of loop
        gh = jnp.dot(h.astype(whh.dtype), whh,
                     preferred_element_type=jnp.float32) + bhh      # (Bt, 3H) f32

        # NOTE: for best VPU/EUP utilization use H % 128 == 0 so the gate slices are
        # lane-tile aligned (the small demo uses H=32, which is correct but masked).
        i_r, i_z, i_n = gi_t[:, 0:H], gi_t[:, H:2 * H], gi_t[:, 2 * H:3 * H]
        h_r, h_z, h_n = gh[:, 0:H], gh[:, H:2 * H], gh[:, 2 * H:3 * H]

        r = jax.nn.sigmoid(i_r + h_r)
        z = jax.nn.sigmoid(i_z + h_z)
        n = jnp.tanh(i_n + r * h_n)          # b_hn is inside gh -> inside r*(...), as in torch
        h = (1.0 - z) * n + z * h

        out_ref[:, t, :] = h.astype(out_ref.dtype)

    h_ref[...] = h


def gru_encoder_forward(src, w_ih, w_hh, b_ih, b_hh, *,
                        time_chunk=None, batch_block=None,
                        matmul_dtype=jnp.bfloat16):
    """src: [B, L, D] (batch_first). PyTorch weight layout:
       w_ih: (3H, D), w_hh: (3H, H), b_ih/b_hh: (3H,).
       Returns (output [B, L, H] f32, hidden [1, B, H] f32)."""
    B, L, D = src.shape
    H = w_hh.shape[1]
    G = 3 * H
    md = matmul_dtype

    wih_t = jnp.transpose(w_ih).astype(md)               # (D, 3H)
    whh_t = jnp.transpose(w_hh).astype(md)               # (H, 3H)
    bih = b_ih.astype(jnp.float32)                       # (3H,)
    bhh = b_hh.reshape(1, G).astype(jnp.float32)         # (1, 3H)

    # ---- (1) Hoisted input projection: one big GEMM over all timesteps (batch-first,
    #          no transpose of src), f32 accumulation. ----
    gi = jnp.einsum("bld,dg->blg", src.astype(md), wih_t,
                    preferred_element_type=jnp.float32) + bih[None, None, :]   # (B, L, 3H) f32

    # ---- (2) Time chunking ----
    if time_chunk is None:
        T = L if L <= 16 else 16        # conservative default; fits v7x's 64 MiB VMEM easily
    else:
        T = int(time_chunk)
    T = max(1, min(T, L))
    nc = -(-L // T)
    if nc > 1 and T % 8 != 0:           # keep the (8,128)-tiling rule on the time dim
        T = ((T + 7) // 8) * 8
        nc = -(-L // T)
    Lp = nc * T
    if Lp != L:
        gi = jnp.pad(gi, ((0, 0), (0, Lp - L), (0, 0)))  # padded steps produce rows we discard

    # ---- Batch tiling (parallel axis -> megacore on v7x) ----
    Bt = batch_block if batch_block is not None else B
    if B % Bt != 0:
        Bt = B
    nb = B // Bt

    kernel = functools.partial(_gru_chunk_kernel, hidden_size=H, chunk=T)

    out = pl.pallas_call(
        kernel,
        out_shape=jax.ShapeDtypeStruct((B, Lp, H), jnp.float32),
        grid_spec=pltpu.PrefetchScalarGridSpec(
            num_scalar_prefetch=0,
            grid=(nb, nc),
            in_specs=[
                pl.BlockSpec((Bt, T, G), lambda b, c: (b, c, 0)),   # gi chunk
                # Grid-invariant operands (constant index_map -> fetched once).
                # TODO(synk): for very large H, single-buffer these (pipeline_mode)
                # to free VMEM on v7x's 64 MiB budget.
                pl.BlockSpec((H, G), lambda b, c: (0, 0)),          # W_hh^T
                pl.BlockSpec((1, G), lambda b, c: (0, 0)),          # b_hh
            ],
            out_specs=pl.BlockSpec((Bt, T, H), lambda b, c: (b, c, 0)),
            scratch_shapes=[pltpu.VMEM((Bt, H), jnp.float32)],      # carried hidden state
        ),
        compiler_params=pltpu.CompilerParams(
            # Time axis must remain "arbitrary" (sequential recurrence); batch axis is
            # independent and may be sharded across TensorCores.
            dimension_semantics=("parallel", "arbitrary"),
        ),
    )(gi, whh_t, bhh)

    output = out[:, :L, :] if Lp != L else out           # [B, L, H]
    hidden = output[:, L - 1, :][None, :, :]             # [1, B, H]  (num_layers*dirs = 1)
    return output, hidden


def _reference_gru(src, w_ih, w_hh, b_ih, b_hh, matmul_dtype=jnp.float32):
    """Pure-JAX reference (lax.scan) matching torch.nn.GRU semantics; `matmul_dtype`
    mirrors the kernel's mixed-precision policy (f32 accumulation everywhere)."""
    B, L, D = src.shape
    H = w_hh.shape[1]
    md = matmul_dtype
    wih_t = jnp.transpose(w_ih).astype(md)
    whh_t = jnp.transpose(w_hh).astype(md)
    bih = b_ih.astype(jnp.float32)
    bhh = b_hh.astype(jnp.float32)

    gi_all = jnp.einsum("bld,dg->blg", src.astype(md), wih_t,
                        preferred_element_type=jnp.float32) + bih[None, None, :]
    gi_tm = jnp.transpose(gi_all, (1, 0, 2))             # [L, B, 3H]

    def step(h, gi):
        gh = jnp.dot(h.astype(md), whh_t, preferred_element_type=jnp.float32) + bhh
        i_r, i_z, i_n = jnp.split(gi, 3, axis=-1)
        h_r, h_z, h_n = jnp.split(gh, 3, axis=-1)
        r = jax.nn.sigmoid(i_r + h_r)
        z = jax.nn.sigmoid(i_z + h_z)
        n = jnp.tanh(i_n + r * h_n)
        h_new = (1.0 - z) * n + z * h
        return h_new, h_new

    h0 = jnp.zeros((B, H), jnp.float32)
    h_last, outs = jax.lax.scan(step, h0, gi_tm)
    return jnp.transpose(outs, (1, 0, 2)), h_last[None]


if __name__ == "__main__":
    # Small shapes implied by the module: src = [batch, len, dim]
    B, L, D, H = 2, 8, 16, 32

    key = jax.random.PRNGKey(0)
    k_src, k_wih, k_whh, k_bih, k_bhh = jax.random.split(key, 5)

    bound = 1.0 / jnp.sqrt(H)  # PyTorch GRU init range U(-1/sqrt(H), 1/sqrt(H))
    src = jax.random.normal(k_src, (B, L, D), jnp.float32)
    w_ih = jax.random.uniform(k_wih, (3 * H, D), jnp.float32, -bound, bound)
    w_hh = jax.random.uniform(k_whh, (3 * H, H), jnp.float32, -bound, bound)
    b_ih = jax.random.uniform(k_bih, (3 * H,), jnp.float32, -bound, bound)
    b_hh = jax.random.uniform(k_bhh, (3 * H,), jnp.float32, -bound, bound)

    # Mixed-precision (bf16 matmuls, f32 state) path -- the default / fast path.
    out_bf, hid_bf = gru_encoder_forward(src, w_ih, w_hh, b_ih, b_hh)
    jax.block_until_ready((out_bf, hid_bf))
    assert out_bf.shape == (B, L, H) and hid_bf.shape == (1, B, H)

    ref_bf_out, ref_bf_hid = _reference_gru(src, w_ih, w_hh, b_ih, b_hh,
                                            matmul_dtype=jnp.bfloat16)
    ref_f32_out, ref_f32_hid = _reference_gru(src, w_ih, w_hh, b_ih, b_hh,
                                              matmul_dtype=jnp.float32)
    # Exact-math check against the same-precision reference.
    assert jnp.allclose(out_bf, ref_bf_out, atol=1e-5, rtol=1e-5)
    assert jnp.allclose(hid_bf, ref_bf_hid, atol=1e-5, rtol=1e-5)
    # Semantics check against the full-f32 torch.nn.GRU reference (bf16 matmul tolerance).
    assert jnp.allclose(out_bf, ref_f32_out, atol=3e-2, rtol=3e-2)
    assert jnp.allclose(hid_bf, ref_f32_hid, atol=3e-2, rtol=3e-2)

    # Full-f32 path: bit-level agreement with the f32 reference.
    out_f32, hid_f32 = gru_encoder_forward(src, w_ih, w_hh, b_ih, b_hh,
                                           matmul_dtype=jnp.float32)
    jax.block_until_ready((out_f32, hid_f32))
    assert jnp.allclose(out_f32, ref_f32_out, atol=1e-5, rtol=1e-5)
    assert jnp.allclose(hid_f32, ref_f32_hid, atol=1e-5, rtol=1e-5)

    print("KERNEL_OK")
</pallas_src>

<mosaic_0001>
module attributes {stable_mosaic.version = 11 : i64} {
  func.func @_gru_chunk_kernel(%arg0: i32, %arg1: i32, %arg2: memref<2x8x96xf32, #tpu.memory_space<vmem>>, %arg3: memref<32x96xbf16, #tpu.memory_space<vmem>>, %arg4: memref<1x96xf32, #tpu.memory_space<vmem>>, %arg5: memref<2x8x32xf32, #tpu.memory_space<vmem>>, %arg6: memref<2x32xf32, #tpu.memory_space<vmem>>) attributes {dimension_semantics = [#tpu.dimension_semantics<parallel>, #tpu.dimension_semantics<arbitrary>], iteration_bounds = array<i64: 1, 1>, scalar_prefetch = 0 : i64, scratch_operands = 1 : i64, tpu.core_type = #tpu.core_type<tc>, window_params = [{transform_indices = @transform_0, window_bounds = array<i64: 2, 8, 96>}, {pipeline_mode = #tpu.pipeline_mode<synchronous>, transform_indices = @transform_1, window_bounds = array<i64: 32, 96>}, {pipeline_mode = #tpu.pipeline_mode<synchronous>, transform_indices = @transform_2, window_bounds = array<i64: 1, 96>}, {transform_indices = @transform_3, window_bounds = array<i64: 2, 8, 32>}]} {
    %c0_i32 = arith.constant 0 : i32
    %0 = arith.cmpi eq, %arg1, %c0_i32 : i32
    %1 = arith.extui %0 : i1 to i32
    %c0_i32_0 = arith.constant 0 : i32
    %2 = arith.cmpi ne, %1, %c0_i32_0 : i32
    scf.if %2 {
      %cst_80 = arith.constant 0.000000e+00 : f32
      %287 = vector.broadcast %cst_80 : f32 to vector<2x32xf32>
      %c0_81 = arith.constant 0 : index
      %c0_82 = arith.constant 0 : index
      %288 = vector.load %arg6[%c0_81, %c0_82] : memref<2x32xf32, #tpu.memory_space<vmem>>, vector<2x32xf32>
      tpu.vector_store %arg6[%c0_81, %c0_82], %287 {strides = array<i32>} : memref<2x32xf32, #tpu.memory_space<vmem>>, vector<2x32xf32>,
    } else {
    }
    %c0 = arith.constant 0 : index
    %c0_1 = arith.constant 0 : index
    %3 = vector.load %arg3[%c0, %c0_1] : memref<32x96xbf16, #tpu.memory_space<vmem>>, vector<32x96xbf16>
    %c0_2 = arith.constant 0 : index
    %c0_3 = arith.constant 0 : index
    %4 = vector.load %arg4[%c0_2, %c0_3] : memref<1x96xf32, #tpu.memory_space<vmem>>, vector<1x96xf32>
    %c0_4 = arith.constant 0 : index
    %c0_5 = arith.constant 0 : index
    %5 = vector.load %arg6[%c0_4, %c0_5] : memref<2x32xf32, #tpu.memory_space<vmem>>, vector<2x32xf32>
    %c0_6 = arith.constant 0 : index
    %c0_7 = arith.constant 0 : index
    %c0_8 = arith.constant 0 : index
    %6 = vector.load %arg2[%c0_6, %c0_7, %c0_8] : memref<2x8x96xf32, #tpu.memory_space<vmem>>, vector<2x1x96xf32>
    %7 = vector.shape_cast %6 : vector<2x1x96xf32> to vector<2x96xf32>
    %8 = arith.truncf %5 : vector<2x32xf32> to vector<2x32xbf16>
    %cst = arith.constant dense<0.000000e+00> : vector<2x96xf32>
    %9 = tpu.matmul %8, %3, %cst {dimension_numbers = #tpu.dot_dimension_numbers<[1], [0], [0], [1], [0, 0, 1, 1], [], []>} : vector<2x32xbf16>, vector<32x96xbf16>, vector<2x96xf32> -> vector<2x96xf32>
    %10 = vector.broadcast %4 : vector<1x96xf32> to vector<2x96xf32>
    %11 = arith.addf %9, %10 : vector<2x96xf32>
    %12 = vector.extract_strided_slice %7 {offsets = [0, 0], sizes = [2, 32], strides = [1, 1]} : vector<2x96xf32> to vector<2x32xf32>
    %13 = vector.extract_strided_slice %7 {offsets = [0, 32], sizes = [2, 32], strides = [1, 1]} : vector<2x96xf32> to vector<2x32xf32>
    %14 = vector.extract_strided_slice %7 {offsets = [0, 64], sizes = [2, 32], strides = [1, 1]} : vector<2x96xf32> to vector<2x32xf32>
    %15 = vector.extract_strided_slice %11 {offsets = [0, 0], sizes = [2, 32], strides = [1, 1]} : vector<2x96xf32> to vector<2x32xf32>
    %16 = vector.extract_strided_slice %11 {offsets = [0, 32], sizes = [2, 32], strides = [1, 1]} : vector<2x96xf32> to vector<2x32xf32>
    %17 = vector.extract_strided_slice %11 {offsets = [0, 64], sizes = [2, 32], strides = [1, 1]} : vector<2x96xf32> to vector<2x32xf32>
    %18 = arith.addf %12, %15 : vector<2x32xf32>
    %19 = arith.negf %18 : vector<2x32xf32>
    %20 = math.exp %19 : vector<2x32xf32>
    %cst_9 = arith.constant 1.000000e+00 : f32
    %21 = vector.broadcast %cst_9 : f32 to vector<2x32xf32>
    %22 = arith.addf %21, %20 : vector<2x32xf32>
    %23 = arith.divf %21, %22 : vector<2x32xf32>
    %24 = arith.addf %13, %16 : vector<2x32xf32>
    %25 = arith.negf %24 : vector<2x32xf32>
    %26 = math.exp %25 : vector<2x32xf32>
    %cst_10 = arith.constant 1.000000e+00 : f32
    %27 = vector.broadcast %cst_10 : f32 to vector<2x32xf32>
    %28 = arith.addf %27, %26 : vector<2x32xf32>
    %29 = arith.divf %27, %28 : vector<2x32xf32>
    %30 = arith.mulf %23, %17 : vector<2x32xf32>
    %31 = arith.addf %14, %30 : vector<2x32xf32>
    %32 = math.tanh %31 : vector<2x32xf32>
    %cst_11 = arith.constant 1.000000e+00 : f32
    %33 = vector.broadcast %cst_11 : f32 to vector<2x32xf32>
    %34 = arith.subf %33, %29 : vector<2x32xf32>
    %35 = arith.mulf %34, %32 : vector<2x32xf32>
    %36 = arith.mulf %29, %5 : vector<2x32xf32>
    %37 = arith.addf %35, %36 : vector<2x32xf32>
    %c0_12 = arith.constant 0 : index
    %c0_13 = arith.constant 0 : index
    %c0_14 = arith.constant 0 : index
    %38 = vector.load %arg5[%c0_12, %c0_13, %c0_14] : memref<2x8x32xf32, #tpu.memory_space<vmem>>, vector<2x1x32xf32>
    %39 = vector.shape_cast %38 : vector<2x1x32xf32> to vector<2x32xf32>
    %40 = vector.shape_cast %37 : vector<2x32xf32> to vector<2x1x32xf32>
    tpu.vector_store %arg5[%c0_12, %c0_13, %c0_14], %40 {strides = array<i32>} : memref<2x8x32xf32, #tpu.memory_space<vmem>>, vector<2x1x32xf32>,
    %c0_15 = arith.constant 0 : index
    %c1 = arith.constant 1 : index
    %c0_16 = arith.constant 0 : index
    %41 = vector.load %arg2[%c0_15, %c1, %c0_16] : memref<2x8x96xf32, #tpu.memory_space<vmem>>, vector<2x1x96xf32>
    %42 = vector.shape_cast %41 : vector<2x1x96xf32> to vector<2x96xf32>
    %43 = arith.truncf %37 : vector<2x32xf32> to vector<2x32xbf16>
    %cst_17 = arith.constant dense<0.000000e+00> : vector<2x96xf32>
    %44 = tpu.matmul %43, %3, %cst_17 {dimension_numbers = #tpu.dot_dimension_numbers<[1], [0], [0], [1], [0, 0, 1, 1], [], []>} : vector<2x32xbf16>, vector<32x96xbf16>, vector<2x96xf32> -> vector<2x96xf32>
    %45 = vector.broadcast %4 : vector<1x96xf32> to vector<2x96xf32>
    %46 = arith.addf %44, %45 : vector<2x96xf32>
    %47 = vector.extract_strided_slice %42 {offsets = [0, 0], sizes = [2, 32], strides = [1, 1]} : vector<2x96xf32> to vector<2x32xf32>
    %48 = vector.extract_strided_slice %42 {offsets = [0, 32], sizes = [2, 32], strides = [1, 1]} : vector<2x96xf32> to vector<2x32xf32>
    %49 = vector.extract_strided_slice %42 {offsets = [0, 64], sizes = [2, 32], strides = [1, 1]} : vector<2x96xf32> to vector<2x32xf32>
    %50 = vector.extract_strided_slice %46 {offsets = [0, 0], sizes = [2, 32], strides = [1, 1]} : vector<2x96xf32> to vector<2x32xf32>
    %51 = vector.extract_strided_slice %46 {offsets = [0, 32], sizes = [2, 32], strides = [1, 1]} : vector<2x96xf32> to vector<2x32xf32>
    %52 = vector.extract_strided_slice %46 {offsets = [0, 64], sizes = [2, 32], strides = [1, 1]} : vector<2x96xf32> to vector<2x32xf32>
    %53 = arith.addf %47, %50 : vector<2x32xf32>
    %54 = arith.negf %53 : vector<2x32xf32>
    %55 = math.exp %54 : vector<2x32xf32>
    %cst_18 = arith.constant 1.000000e+00 : f32
    %56 = vector.broadcast %cst_18 : f32 to vector<2x32xf32>
    %57 = arith.addf %56, %55 : vector<2x32xf32>
    %58 = arith.divf %56, %57 : vector<2x32xf32>
    %59 = arith.addf %48, %51 : vector<2x32xf32>
    %60 = arith.negf %59 : vector<2x32xf32>
    %61 = math.exp %60 : vector<2x32xf32>
    %cst_19 = arith.constant 1.000000e+00 : f32
    %62 = vector.broadcast %cst_19 : f32 to vector<2x32xf32>
    %63 = arith.addf %62, %61 : vector<2x32xf32>
    %64 = arith.divf %62, %63 : vector<2x32xf32>
    %65 = arith.mulf %58, %52 : vector<2x32xf32>
    %66 = arith.addf %49, %65 : vector<2x32xf32>
    %67 = math.tanh %66 : vector<2x32xf32>
    %cst_20 = arith.constant 1.000000e+00 : f32
    %68 = vector.broadcast %cst_20 : f32 to vector<2x32xf32>
    %69 = arith.subf %68, %64 : vector<2x32xf32>
    %70 = arith.mulf %69, %67 : vector<2x32xf32>
    %71 = arith.mulf %64, %37 : vector<2x32xf32>
    %72 = arith.addf %70, %71 : vector<2x32xf32>
    %c0_21 = arith.constant 0 : index
    %c1_22 = arith.constant 1 : index
    %c0_23 = arith.constant 0 : index
    %73 = vector.load %arg5[%c0_21, %c1_22, %c0_23] : memref<2x8x32xf32, #tpu.memory_space<vmem>>, vector<2x1x32xf32>
    %74 = vector.shape_cast %73 : vector<2x1x32xf32> to vector<2x32xf32>
    %75 = vector.shape_cast %72 : vector<2x32xf32> to vector<2x1x32xf32>
    tpu.vector_store %arg5[%c0_21, %c1_22, %c0_23], %75 {strides = array<i32>} : memref<2x8x32xf32, #tpu.memory_space<vmem>>, vector<2x1x32xf32>,
    %c0_24 = arith.constant 0 : index
    %c2 = arith.constant 2 : index
    %c0_25 = arith.constant 0 : index
    %76 = vector.load %arg2[%c0_24, %c2, %c0_25] : memref<2x8x96xf32, #tpu.memory_space<vmem>>, vector<2x1x96xf32>
    %77 = vector.shape_cast %76 : vector<2x1x96xf32> to vector<2x96xf32>
    %78 = arith.truncf %72 : vector<2x32xf32> to vector<2x32xbf16>
    %cst_26 = arith.constant dense<0.000000e+00> : vector<2x96xf32>
    %79 = tpu.matmul %78, %3, %cst_26 {dimension_numbers = #tpu.dot_dimension_numbers<[1], [0], [0], [1], [0, 0, 1, 1], [], []>} : vector<2x32xbf16>, vector<32x96xbf16>, vector<2x96xf32> -> vector<2x96xf32>
    %80 = vector.broadcast %4 : vector<1x96xf32> to vector<2x96xf32>
    %81 = arith.addf %79, %80 : vector<2x96xf32>
    %82 = vector.extract_strided_slice %77 {offsets = [0, 0], sizes = [2, 32], strides = [1, 1]} : vector<2x96xf32> to vector<2x32xf32>
    %83 = vector.extract_strided_slice %77 {offsets = [0, 32], sizes = [2, 32], strides = [1, 1]} : vector<2x96xf32> to vector<2x32xf32>
    %84 = vector.extract_strided_slice %77 {offsets = [0, 64], sizes = [2, 32], strides = [1, 1]} : vector<2x96xf32> to vector<2x32xf32>
    %85 = vector.extract_strided_slice %81 {offsets = [0, 0], sizes = [2, 32], strides = [1, 1]} : vector<2x96xf32> to vector<2x32xf32>
    %86 = vector.extract_strided_slice %81 {offsets = [0, 32], sizes = [2, 32], strides = [1, 1]} : vector<2x96xf32> to vector<2x32xf32>
    %87 = vector.extract_strided_slice %81 {offsets = [0, 64], sizes = [2, 32], strides = [1, 1]} : vector<2x96xf32> to vector<2x32xf32>
    %88 = arith.addf %82, %85 : vector<2x32xf32>
    %89 = arith.negf %88 : vector<2x32xf32>
    %90 = math.exp %89 : vector<2x32xf32>
    %cst_27 = arith.constant 1.000000e+00 : f32
    %91 = vector.broadcast %cst_27 : f32 to vector<2x32xf32>
    %92 = arith.addf %91, %90 : vector<2x32xf32>
    %93 = arith.divf %91, %92 : vector<2x32xf32>
    %94 = arith.addf %83, %86 : vector<2x32xf32>
    %95 = arith.negf %94 : vector<2x32xf32>
    %96 = math.exp %95 : vector<2x32xf32>
    %cst_28 = arith.constant 1.000000e+00 : f32
    %97 = vector.broadcast %cst_28 : f32 to vector<2x32xf32>
    %98 = arith.addf %97, %96 : vector<2x32xf32>
    %99 = arith.divf %97, %98 : vector<2x32xf32>
    %100 = arith.mulf %93, %87 : vector<2x32xf32>
    %101 = arith.addf %84, %100 : vector<2x32xf32>
    %102 = math.tanh %101 : vector<2x32xf32>
    %cst_29 = arith.constant 1.000000e+00 : f32
    %103 = vector.broadcast %cst_29 : f32 to vector<2x32xf32>
    %104 = arith.subf %103, %99 : vector<2x32xf32>
    %105 = arith.mulf %104, %102 : vector<2x32xf32>
    %106 = arith.mulf %99, %72 : vector<2x32xf32>
    %107 = arith.addf %105, %106 : vector<2x32xf32>
    %c0_30 = arith.constant 0 : index
    %c2_31 = arith.constant 2 : index
    %c0_32 = arith.constant 0 : index
    %108 = vector.load %arg5[%c0_30, %c2_31, %c0_32] : memref<2x8x32xf32, #tpu.memory_space<vmem>>, vector<2x1x32xf32>
    %109 = vector.shape_cast %108 : vector<2x1x32xf32> to vector<2x32xf32>
    %110 = vector.shape_cast %107 : vector<2x32xf32> to vector<2x1x32xf32>
    tpu.vector_store %arg5[%c0_30, %c2_31, %c0_32], %110 {strides = array<i32>} : memref<2x8x32xf32, #tpu.memory_space<vmem>>, vector<2x1x32xf32>,
    %c0_33 = arith.constant 0 : index
    %c3 = arith.constant 3 : index
    %c0_34 = arith.constant 0 : index
    %111 = vector.load %arg2[%c0_33, %c3, %c0_34] : memref<2x8x96xf32, #tpu.memory_space<vmem>>, vector<2x1x96xf32>
    %112 = vector.shape_cast %111 : vector<2x1x96xf32> to vector<2x96xf32>
    %113 = arith.truncf %107 : vector<2x32xf32> to vector<2x32xbf16>
    %cst_35 = arith.constant dense<0.000000e+00> : vector<2x96xf32>
    %114 = tpu.matmul %113, %3, %cst_35 {dimension_numbers = #tpu.dot_dimension_numbers<[1], [0], [0], [1], [0, 0, 1, 1], [], []>} : vector<2x32xbf16>, vector<32x96xbf16>, vector<2x96xf32> -> vector<2x96xf32>
    %115 = vector.broadcast %4 : vector<1x96xf32> to vector<2x96xf32>
    %116 = arith.addf %114, %115 : vector<2x96xf32>
    %117 = vector.extract_strided_slice %112 {offsets = [0, 0], sizes = [2, 32], strides = [1, 1]} : vector<2x96xf32> to vector<2x32xf32>
    %118 = vector.extract_strided_slice %112 {offsets = [0, 32], sizes = [2, 32], strides = [1, 1]} : vector<2x96xf32> to vector<2x32xf32>
    %119 = vector.extract_strided_slice %112 {offsets = [0, 64], sizes = [2, 32], strides = [1, 1]} : vector<2x96xf32> to vector<2x32xf32>
    %120 = vector.extract_strided_slice %116 {offsets = [0, 0], sizes = [2, 32], strides = [1, 1]} : vector<2x96xf32> to vector<2x32xf32>
    %121 = vector.extract_strided_slice %116 {offsets = [0, 32], sizes = [2, 32], strides = [1, 1]} : vector<2x96xf32> to vector<2x32xf32>
    %122 = vector.extract_strided_slice %116 {offsets = [0, 64], sizes = [2, 32], strides = [1, 1]} : vector<2x96xf32> to vector<2x32xf32>
    %123 = arith.addf %117, %120 : vector<2x32xf32>
    %124 = arith.negf %123 : vector<2x32xf32>
    %125 = math.exp %124 : vector<2x32xf32>
    %cst_36 = arith.constant 1.000000e+00 : f32
    %126 = vector.broadcast %cst_36 : f32 to vector<2x32xf32>
    %127 = arith.addf %126, %125 : vector<2x32xf32>
    %128 = arith.divf %126, %127 : vector<2x32xf32>
    %129 = arith.addf %118, %121 : vector<2x32xf32>
    %130 = arith.negf %129 : vector<2x32xf32>
    %131 = math.exp %130 : vector<2x32xf32>
    %cst_37 = arith.constant 1.000000e+00 : f32
    %132 = vector.broadcast %cst_37 : f32 to vector<2x32xf32>
    %133 = arith.addf %132, %131 : vector<2x32xf32>
    %134 = arith.divf %132, %133 : vector<2x32xf32>
    %135 = arith.mulf %128, %122 : vector<2x32xf32>
    %136 = arith.addf %119, %135 : vector<2x32xf32>
    %137 = math.tanh %136 : vector<2x32xf32>
    %cst_38 = arith.constant 1.000000e+00 : f32
    %138 = vector.broadcast %cst_38 : f32 to vector<2x32xf32>
    %139 = arith.subf %138, %134 : vector<2x32xf32>
    %140 = arith.mulf %139, %137 : vector<2x32xf32>
    %141 = arith.mulf %134, %107 : vector<2x32xf32>
    %142 = arith.addf %140, %141 : vector<2x32xf32>
    %c0_39 = arith.constant 0 : index
    %c3_40 = arith.constant 3 : index
    %c0_41 = arith.constant 0 : index
    %143 = vector.load %arg5[%c0_39, %c3_40, %c0_41] : memref<2x8x32xf32, #tpu.memory_space<vmem>>, vector<2x1x32xf32>
    %144 = vector.shape_cast %143 : vector<2x1x32xf32> to vector<2x32xf32>
    %145 = vector.shape_cast %142 : vector<2x32xf32> to vector<2x1x32xf32>
    tpu.vector_store %arg5[%c0_39, %c3_40, %c0_41], %145 {strides = array<i32>} : memref<2x8x32xf32, #tpu.memory_space<vmem>>, vector<2x1x32xf32>,
    %c0_42 = arith.constant 0 : index
    %c4 = arith.constant 4 : index
    %c0_43 = arith.constant 0 : index
    %146 = vector.load %arg2[%c0_42, %c4, %c0_43] : memref<2x8x96xf32, #tpu.memory_space<vmem>>, vector<2x1x96xf32>
    %147 = vector.shape_cast %146 : vector<2x1x96xf32> to vector<2x96xf32>
    %148 = arith.truncf %142 : vector<2x32xf32> to vector<2x32xbf16>
    %cst_44 = arith.constant dense<0.000000e+00> : vector<2x96xf32>
    %149 = tpu.matmul %148, %3, %cst_44 {dimension_numbers = #tpu.dot_dimension_numbers<[1], [0], [0], [1], [0, 0, 1, 1], [], []>} : vector<2x32xbf16>, vector<32x96xbf16>, vector<2x96xf32> -> vector<2x96xf32>
    %150 = vector.broadcast %4 : vector<1x96xf32> to vector<2x96xf32>
    %151 = arith.addf %149, %150 : vector<2x96xf32>
    %152 = vector.extract_strided_slice %147 {offsets = [0, 0], sizes = [2, 32], strides = [1, 1]} : vector<2x96xf32> to vector<2x32xf32>
    %153 = vector.extract_strided_slice %147 {offsets = [0, 32], sizes = [2, 32], strides = [1, 1]} : vector<2x96xf32> to vector<2x32xf32>
    %154 = vector.extract_strided_slice %147 {offsets = [0, 64], sizes = [2, 32], strides = [1, 1]} : vector<2x96xf32> to vector<2x32xf32>
    %155 = vector.extract_strided_slice %151 {offsets = [0, 0], sizes = [2, 32], strides = [1, 1]} : vector<2x96xf32> to vector<2x32xf32>
    %156 = vector.extract_strided_slice %151 {offsets = [0, 32], sizes = [2, 32], strides = [1, 1]} : vector<2x96xf32> to vector<2x32xf32>
    %157 = vector.extract_strided_slice %151 {offsets = [0, 64], sizes = [2, 32], strides = [1, 1]} : vector<2x96xf32> to vector<2x32xf32>
    %158 = arith.addf %152, %155 : vector<2x32xf32>
    %159 = arith.negf %158 : vector<2x32xf32>
    %160 = math.exp %159 : vector<2x32xf32>
    %cst_45 = arith.constant 1.000000e+00 : f32
    %161 = vector.broadcast %cst_45 : f32 to vector<2x32xf32>
    %162 = arith.addf %161, %160 : vector<2x32xf32>
    %163 = arith.divf %161, %162 : vector<2x32xf32>
    %164 = arith.addf %153, %156 : vector<2x32xf32>
    %165 = arith.negf %164 : vector<2x32xf32>
    %166 = math.exp %165 : vector<2x32xf32>
    %cst_46 = arith.constant 1.000000e+00 : f32
    %167 = vector.broadcast %cst_46 : f32 to vector<2x32xf32>
    %168 = arith.addf %167, %166 : vector<2x32xf32>
    %169 = arith.divf %167, %168 : vector<2x32xf32>
    %170 = arith.mulf %163, %157 : vector<2x32xf32>
    %171 = arith.addf %154, %170 : vector<2x32xf32>
    %172 = math.tanh %171 : vector<2x32xf32>
    %cst_47 = arith.constant 1.000000e+00 : f32
    %173 = vector.broadcast %cst_47 : f32 to vector<2x32xf32>
    %174 = arith.subf %173, %169 : vector<2x32xf32>
    %175 = arith.mulf %174, %172 : vector<2x32xf32>
    %176 = arith.mulf %169, %142 : vector<2x32xf32>
    %177 = arith.addf %175, %176 : vector<2x32xf32>
    %c0_48 = arith.constant 0 : index
    %c4_49 = arith.constant 4 : index
    %c0_50 = arith.constant 0 : index
    %178 = vector.load %arg5[%c0_48, %c4_49, %c0_50] : memref<2x8x32xf32, #tpu.memory_space<vmem>>, vector<2x1x32xf32>
    %179 = vector.shape_cast %178 : vector<2x1x32xf32> to vector<2x32xf32>
    %180 = vector.shape_cast %177 : vector<2x32xf32> to vector<2x1x32xf32>
    tpu.vector_store %arg5[%c0_48, %c4_49, %c0_50], %180 {strides = array<i32>} : memref<2x8x32xf32, #tpu.memory_space<vmem>>, vector<2x1x32xf32>,
    %c0_51 = arith.constant 0 : index
    %c5 = arith.constant 5 : index
    %c0_52 = arith.constant 0 : index
    %181 = vector.load %arg2[%c0_51, %c5, %c0_52] : memref<2x8x96xf32, #tpu.memory_space<vmem>>, vector<2x1x96xf32>
    %182 = vector.shape_cast %181 : vector<2x1x96xf32> to vector<2x96xf32>
    %183 = arith.truncf %177 : vector<2x32xf32> to vector<2x32xbf16>
    %cst_53 = arith.constant dense<0.000000e+00> : vector<2x96xf32>
    %184 = tpu.matmul %183, %3, %cst_53 {dimension_numbers = #tpu.dot_dimension_numbers<[1], [0], [0], [1], [0, 0, 1, 1], [], []>} : vector<2x32xbf16>, vector<32x96xbf16>, vector<2x96xf32> -> vector<2x96xf32>
    %185 = vector.broadcast %4 : vector<1x96xf32> to vector<2x96xf32>
    %186 = arith.addf %184, %185 : vector<2x96xf32>
    %187 = vector.extract_strided_slice %182 {offsets = [0, 0], sizes = [2, 32], strides = [1, 1]} : vector<2x96xf32> to vector<2x32xf32>
    %188 = vector.extract_strided_slice %182 {offsets = [0, 32], sizes = [2, 32], strides = [1, 1]} : vector<2x96xf32> to vector<2x32xf32>
    %189 = vector.extract_strided_slice %182 {offsets = [0, 64], sizes = [2, 32], strides = [1, 1]} : vector<2x96xf32> to vector<2x32xf32>
    %190 = vector.extract_strided_slice %186 {offsets = [0, 0], sizes = [2, 32], strides = [1, 1]} : vector<2x96xf32> to vector<2x32xf32>
    %191 = vector.extract_strided_slice %186 {offsets = [0, 32], sizes = [2, 32], strides = [1, 1]} : vector<2x96xf32> to vector<2x32xf32>
    %192 = vector.extract_strided_slice %186 {offsets = [0, 64], sizes = [2, 32], strides = [1, 1]} : vector<2x96xf32> to vector<2x32xf32>
    %193 = arith.addf %187, %190 : vector<2x32xf32>
    %194 = arith.negf %193 : vector<2x32xf32>
    %195 = math.exp %194 : vector<2x32xf32>
    %cst_54 = arith.constant 1.000000e+00 : f32
    %196 = vector.broadcast %cst_54 : f32 to vector<2x32xf32>
    %197 = arith.addf %196, %195 : vector<2x32xf32>
    %198 = arith.divf %196, %197 : vector<2x32xf32>
    %199 = arith.addf %188, %191 : vector<2x32xf32>
    %200 = arith.negf %199 : vector<2x32xf32>
    %201 = math.exp %200 : vector<2x32xf32>
    %cst_55 = arith.constant 1.000000e+00 : f32
    %202 = vector.broadcast %cst_55 : f32 to vector<2x32xf32>
    %203 = arith.addf %202, %201 : vector<2x32xf32>
    %204 = arith.divf %202, %203 : vector<2x32xf32>
    %205 = arith.mulf %198, %192 : vector<2x32xf32>
    %206 = arith.addf %189, %205 : vector<2x32xf32>
    %207 = math.tanh %206 : vector<2x32xf32>
    %cst_56 = arith.constant 1.000000e+00 : f32
    %208 = vector.broadcast %cst_56 : f32 to vector<2x32xf32>
    %209 = arith.subf %208, %204 : vector<2x32xf32>
    %210 = arith.mulf %209, %207 : vector<2x32xf32>
    %211 = arith.mulf %204, %177 : vector<2x32xf32>
    %212 = arith.addf %210, %211 : vector<2x32xf32>
    %c0_57 = arith.constant 0 : index
    %c5_58 = arith.constant 5 : index
    %c0_59 = arith.constant 0 : index
    %213 = vector.load %arg5[%c0_57, %c5_58, %c0_59] : memref<2x8x32xf32, #tpu.memory_space<vmem>>, vector<2x1x32xf32>
    %214 = vector.shape_cast %213 : vector<2x1x32xf32> to vector<2x32xf32>
    %215 = vector.shape_cast %212 : vector<2x32xf32> to vector<2x1x32xf32>
    tpu.vector_store %arg5[%c0_57, %c5_58, %c0_59], %215 {strides = array<i32>} : memref<2x8x32xf32, #tpu.memory_space<vmem>>, vector<2x1x32xf32>,
    %c0_60 = arith.constant 0 : index
    %c6 = arith.constant 6 : index
    %c0_61 = arith.constant 0 : index
    %216 = vector.load %arg2[%c0_60, %c6, %c0_61] : memref<2x8x96xf32, #tpu.memory_space<vmem>>, vector<2x1x96xf32>
    %217 = vector.shape_cast %216 : vector<2x1x96xf32> to vector<2x96xf32>
    %218 = arith.truncf %212 : vector<2x32xf32> to vector<2x32xbf16>
    %cst_62 = arith.constant dense<0.000000e+00> : vector<2x96xf32>
    %219 = tpu.matmul %218, %3, %cst_62 {dimension_numbers = #tpu.dot_dimension_numbers<[1], [0], [0], [1], [0, 0, 1, 1], [], []>} : vector<2x32xbf16>, vector<32x96xbf16>, vector<2x96xf32> -> vector<2x96xf32>
    %220 = vector.broadcast %4 : vector<1x96xf32> to vector<2x96xf32>
    %221 = arith.addf %219, %220 : vector<2x96xf32>
    %222 = vector.extract_strided_slice %217 {offsets = [0, 0], sizes = [2, 32], strides = [1, 1]} : vector<2x96xf32> to vector<2x32xf32>
    %223 = vector.extract_strided_slice %217 {offsets = [0, 32], sizes = [2, 32], strides = [1, 1]} : vector<2x96xf32> to vector<2x32xf32>
    %224 = vector.extract_strided_slice %217 {offsets = [0, 64], sizes = [2, 32], strides = [1, 1]} : vector<2x96xf32> to vector<2x32xf32>
    %225 = vector.extract_strided_slice %221 {offsets = [0, 0], sizes = [2, 32], strides = [1, 1]} : vector<2x96xf32> to vector<2x32xf32>
    %226 = vector.extract_strided_slice %221 {offsets = [0, 32], sizes = [2, 32], strides = [1, 1]} : vector<2x96xf32> to vector<2x32xf32>
    %227 = vector.extract_strided_slice %221 {offsets = [0, 64], sizes = [2, 32], strides = [1, 1]} : vector<2x96xf32> to vector<2x32xf32>
    %228 = arith.addf %222, %225 : vector<2x32xf32>
    %229 = arith.negf %228 : vector<2x32xf32>
    %230 = math.exp %229 : vector<2x32xf32>
    %cst_63 = arith.constant 1.000000e+00 : f32
    %231 = vector.broadcast %cst_63 : f32 to vector<2x32xf32>
    %232 = arith.addf %231, %230 : vector<2x32xf32>
    %233 = arith.divf %231, %232 : vector<2x32xf32>
    %234 = arith.addf %223, %226 : vector<2x32xf32>
    %235 = arith.negf %234 : vector<2x32xf32>
    %236 = math.exp %235 : vector<2x32xf32>
    %cst_64 = arith.constant 1.000000e+00 : f32
    %237 = vector.broadcast %cst_64 : f32 to vector<2x32xf32>
    %238 = arith.addf %237, %236 : vector<2x32xf32>
    %239 = arith.divf %237, %238 : vector<2x32xf32>
    %240 = arith.mulf %233, %227 : vector<2x32xf32>
    %241 = arith.addf %224, %240 : vector<2x32xf32>
    %242 = math.tanh %241 : vector<2x32xf32>
    %cst_65 = arith.constant 1.000000e+00 : f32
    %243 = vector.broadcast %cst_65 : f32 to vector<2x32xf32>
    %244 = arith.subf %243, %239 : vector<2x32xf32>
    %245 = arith.mulf %244, %242 : vector<2x32xf32>
    %246 = arith.mulf %239, %212 : vector<2x32xf32>
    %247 = arith.addf %245, %246 : vector<2x32xf32>
    %c0_66 = arith.constant 0 : index
    %c6_67 = arith.constant 6 : index
    %c0_68 = arith.constant 0 : index
    %248 = vector.load %arg5[%c0_66, %c6_67, %c0_68] : memref<2x8x32xf32, #tpu.memory_space<vmem>>, vector<2x1x32xf32>
    %249 = vector.shape_cast %248 : vector<2x1x32xf32> to vector<2x32xf32>
    %250 = vector.shape_cast %247 : vector<2x32xf32> to vector<2x1x32xf32>
    tpu.vector_store %arg5[%c0_66, %c6_67, %c0_68], %250 {strides = array<i32>} : memref<2x8x32xf32, #tpu.memory_space<vmem>>, vector<2x1x32xf32>,
    %c0_69 = arith.constant 0 : index
    %c7 = arith.constant 7 : index
    %c0_70 = arith.constant 0 : index
    %251 = vector.load %arg2[%c0_69, %c7, %c0_70] : memref<2x8x96xf32, #tpu.memory_space<vmem>>, vector<2x1x96xf32>
    %252 = vector.shape_cast %251 : vector<2x1x96xf32> to vector<2x96xf32>
    %253 = arith.truncf %247 : vector<2x32xf32> to vector<2x32xbf16>
    %cst_71 = arith.constant dense<0.000000e+00> : vector<2x96xf32>
    %254 = tpu.matmul %253, %3, %cst_71 {dimension_numbers = #tpu.dot_dimension_numbers<[1], [0], [0], [1], [0, 0, 1, 1], [], []>} : vector<2x32xbf16>, vector<32x96xbf16>, vector<2x96xf32> -> vector<2x96xf32>
    %255 = vector.broadcast %4 : vector<1x96xf32> to vector<2x96xf32>
    %256 = arith.addf %254, %255 : vector<2x96xf32>
    %257 = vector.extract_strided_slice %252 {offsets = [0, 0], sizes = [2, 32], strides = [1, 1]} : vector<2x96xf32> to vector<2x32xf32>
    %258 = vector.extract_strided_slice %252 {offsets = [0, 32], sizes = [2, 32], strides = [1, 1]} : vector<2x96xf32> to vector<2x32xf32>
    %259 = vector.extract_strided_slice %252 {offsets = [0, 64], sizes = [2, 32], strides = [1, 1]} : vector<2x96xf32> to vector<2x32xf32>
    %260 = vector.extract_strided_slice %256 {offsets = [0, 0], sizes = [2, 32], strides = [1, 1]} : vector<2x96xf32> to vector<2x32xf32>
    %261 = vector.extract_strided_slice %256 {offsets = [0, 32], sizes = [2, 32], strides = [1, 1]} : vector<2x96xf32> to vector<2x32xf32>
    %262 = vector.extract_strided_slice %256 {offsets = [0, 64], sizes = [2, 32], strides = [1, 1]} : vector<2x96xf32> to vector<2x32xf32>
    %263 = arith.addf %257, %260 : vector<2x32xf32>
    %264 = arith.negf %263 : vector<2x32xf32>
    %265 = math.exp %264 : vector<2x32xf32>
    %cst_72 = arith.constant 1.000000e+00 : f32
    %266 = vector.broadcast %cst_72 : f32 to vector<2x32xf32>
    %267 = arith.addf %266, %265 : vector<2x32xf32>
    %268 = arith.divf %266, %267 : vector<2x32xf32>
    %269 = arith.addf %258, %261 : vector<2x32xf32>
    %270 = arith.negf %269 : vector<2x32xf32>
    %271 = math.exp %270 : vector<2x32xf32>
    %cst_73 = arith.constant 1.000000e+00 : f32
    %272 = vector.broadcast %cst_73 : f32 to vector<2x32xf32>
    %273 = arith.addf %272, %271 : vector<2x32xf32>
    %274 = arith.divf %272, %273 : vector<2x32xf32>
    %275 = arith.mulf %268, %262 : vector<2x32xf32>
    %276 = arith.addf %259, %275 : vector<2x32xf32>
    %277 = math.tanh %276 : vector<2x32xf32>
    %cst_74 = arith.constant 1.000000e+00 : f32
    %278 = vector.broadcast %cst_74 : f32 to vector<2x32xf32>
    %279 = arith.subf %278, %274 : vector<2x32xf32>
    %280 = arith.mulf %279, %277 : vector<2x32xf32>
    %281 = arith.mulf %274, %247 : vector<2x32xf32>
    %282 = arith.addf %280, %281 : vector<2x32xf32>
    %c0_75 = arith.constant 0 : index
    %c7_76 = arith.constant 7 : index
    %c0_77 = arith.constant 0 : index
    %283 = vector.load %arg5[%c0_75, %c7_76, %c0_77] : memref<2x8x32xf32, #tpu.memory_space<vmem>>, vector<2x1x32xf32>
    %284 = vector.shape_cast %283 : vector<2x1x32xf32> to vector<2x32xf32>
    %285 = vector.shape_cast %282 : vector<2x32xf32> to vector<2x1x32xf32>
    tpu.vector_store %arg5[%c0_75, %c7_76, %c0_77], %285 {strides = array<i32>} : memref<2x8x32xf32, #tpu.memory_space<vmem>>, vector<2x1x32xf32>,
    %c0_78 = arith.constant 0 : index
    %c0_79 = arith.constant 0 : index
    %286 = vector.load %arg6[%c0_78, %c0_79] : memref<2x32xf32, #tpu.memory_space<vmem>>, vector<2x32xf32>
    tpu.vector_store %arg6[%c0_78, %c0_79], %282 {strides = array<i32>} : memref<2x32xf32, #tpu.memory_space<vmem>>, vector<2x32xf32>,
    return
  }
  func.func @transform_0(%arg0: i32, %arg1: i32) -> (i32, i32, i32) {
    %c0_i32 = arith.constant 0 : i32
    %c0_i32_0 = arith.constant 0 : i32
    return %arg0, %arg1, %c0_i32 : i32, i32, i32
  }
  func.func @transform_1(%arg0: i32, %arg1: i32) -> (i32, i32) {
    %c0_i32 = arith.constant 0 : i32
    %c0_i32_0 = arith.constant 0 : i32
    %c0_i32_1 = arith.constant 0 : i32
    return %c0_i32, %c0_i32_0 : i32, i32
  }
  func.func @transform_2(%arg0: i32, %arg1: i32) -> (i32, i32) {
    %c0_i32 = arith.constant 0 : i32
    %c0_i32_0 = arith.constant 0 : i32
    %c0_i32_1 = arith.constant 0 : i32
    return %c0_i32, %c0_i32_0 : i32, i32
  }
  func.func @transform_3(%arg0: i32, %arg1: i32) -> (i32, i32, i32) {
    %c0_i32 = arith.constant 0 : i32
    %c0_i32_0 = arith.constant 0 : i32
    return %arg0, %arg1, %c0_i32 : i32, i32, i32
  }
}

</mosaic_0001>

<llo_original>
// kernel: tpu_custom_call.1
$region0: #{tpu_custom_call.1}
  #allocation0 [shape = 'u32[]', space=smem, size = 0x4, offset = 0x4, fixed_abs, tag = 'smem constant byte address 0x4 - core index']
  #allocation1 [shape = 'u32[144,128]{1,0:T(1,128)}', space=vmem, size = 0x12000, scoped, tag = 'internal scratch']
  #allocation2 [shape = 'f32[2,32]{1,0:T(2,128)}', space=vmem, size = 0x400, scoped, tag = 'scratch operand']
  %s0 = inlined_call_operand.hbm [shape: f32[2,8,96], index: 0, kind: input, shape index: {}]
  %s1 = inlined_call_operand.hbm [shape: bf16[32,96], index: 1, kind: input, shape index: {}]
  %s2 = inlined_call_operand.vmem [shape: f32[1,96], index: 2, kind: input, shape index: {}]
  %s3 = inlined_call_operand.hbm [shape: f32[2,8,32], index: 3, kind: output, shape index: {}]
  %s4 = sld [smem:[#allocation0]]
  $region34: #{tpu_custom_call.1} parent=0
    _
  %s6 = ssub.s32 1, %s4
  %s7 = scalar_select 0, %s6, %s4
  $region1: #{tpu_custom_call.1} parent=0
    #allocation3 [shape = 'u8[8192]{0}', space=vmem, size = 0x2000, scoped, tag = 'input window, operand 0, single buffered']
    #allocation4 [shape = 's32[1]{0}', space=sflag, size = 0x4, scoped, tag = 'scoped memory for tpu_custom_call.1']
    #allocation5 [shape = 's32[1]{0}', space=sflag, size = 0x4, scoped, tag = 'scoped memory for tpu_custom_call.1']
    #allocation6 [shape = 'u8[8192]{0}', space=vmem, size = 0x2000, scoped, tag = 'input window, operand 1, single buffered']
    #allocation7 [shape = 's32[1]{0}', space=sflag, size = 0x4, scoped, tag = 'scoped memory for tpu_custom_call.1']
    #allocation8 [shape = 'u8[8192]{0}', space=vmem, size = 0x2000, scoped, tag = 'output window, operand 0, single buffered']
    %8 = vsyncpa [#allocation4], 0
    %9 = vsyncpa [#allocation7], 0
    %10 = vsyncpa [#allocation5], 0
    // Predicated region
    $region2: #{tpu_custom_call.1} parent=1 // pred_check
      _
    $region3: #{tpu_custom_call.1} parent=1 // pred_check_branch
      %12 = sbr.rel (0) target = $region5
    $region4: #{tpu_custom_call.1} parent=1 // pred_region
      %s14 = ssub.s32 256, 256
      %15 = vsyncadd [#allocation4], %s14
      %s16 = sshll.u32 [#allocation3], 4
      %s17 = int_to_ptr.vmem [resolvable:$true] %s16
      %22 = dma.hbm_to_vmem [thread:$0]  %s0, 256, %s17, [#allocation4], 128, 128, 8
    $region5: #{tpu_custom_call.1} parent=1 // pred_fallthru
      _
    // Predicated region
    $region6: #{tpu_custom_call.1} parent=1 // pred_check
      _
    $region7: #{tpu_custom_call.1} parent=1 // pred_check_branch
      %24 = sbr.rel (0) target = $region9
    $region8: #{tpu_custom_call.1} parent=1 // pred_region
      %s26 = ssub.s32 256, 256
      %27 = vsyncadd [#allocation7], %s26
      %s28 = sshll.u32 [#allocation6], 4
      %s29 = int_to_ptr.vmem [resolvable:$true] %s28
      %34 = dma.hbm_to_vmem [thread:$0]  %s1, 256, %s29, [#allocation7], 64, 64, 4
    $region9: #{tpu_custom_call.1} parent=1 // pred_fallthru
      _
    // Predicated region
    $region10: #{tpu_custom_call.1} parent=1 // pred_check
      _
    $region11: #{tpu_custom_call.1} parent=1 // pred_check_branch
      %36 = sbr.rel (0) target = $region13
    $region12: #{tpu_custom_call.1} parent=1 // pred_region
      _
    $region13: #{tpu_custom_call.1} parent=1 // pred_fallthru
      _
    // Predicated region
    $region14: #{tpu_custom_call.1} parent=1 // pred_check
      _
    $region15: #{tpu_custom_call.1} parent=1 // pred_check_branch
      %38 = sbr.rel (0) target = $region17
    $region16: #{tpu_custom_call.1} parent=1 // pred_region
      %39 = dma.done [#allocation4], 256
    $region17: #{tpu_custom_call.1} parent=1 // pred_fallthru
      _
    // Predicated region
    $region18: #{tpu_custom_call.1} parent=1 // pred_check
      _
    $region19: #{tpu_custom_call.1} parent=1 // pred_check_branch
      %41 = sbr.rel (0) target = $region21
    $region20: #{tpu_custom_call.1} parent=1 // pred_region
      %42 = dma.done [#allocation7], 256
    $region21: #{tpu_custom_call.1} parent=1 // pred_fallthru
      _
    %p44 = scmp.eq.s32.totalorder 0, 0
    // Predicated region
    $region22: #{tpu_custom_call.1} parent=1 // pred_check
      %p45 = pneg %p44
    $region23: #{tpu_custom_call.1} parent=1 // pred_check_branch
      %47 = sbr.rel (%p45) target = $region25
    $region24: #{tpu_custom_call.1} parent=1 // pred_region
      %vm48 = vcmask 254976
      %49 = vst.msk [vmem:[#allocation2] sm:$0x3] %vm48, 0.0
    $region25: #{tpu_custom_call.1} parent=1 // pred_fallthru
      _
    %v50 = vld [vmem:[#allocation6] sm:$0xf]
    %v51 = vld [vmem:[#allocation6 + $0x4] sm:$0xf]
    %v52 = vld [vmem:[#allocation6 + $0x8] sm:$0xf]
    %v53 = vld [vmem:[#allocation6 + $0xc] sm:$0xf]
    %v54 = vld [vmem:[%s2] sm:$0x1]
    %v55 = vld [vmem:[#allocation2] sm:$0x3]
    %v56 = vld [vmem:[#allocation3] sm:$0x1]
    %v57 = vld [vmem:[#allocation3 + $0x8] sm:$0x1]
    %v58 = vpack.c.bf16 %v55, %v55
    %v60 = vlaneseq
    %v61 = vshrl.u32 %v60, 7
    %v62 = vsub.s32 0, %v61
    %v63 = vrot.slane %v54, %v62
    %v69 = vunpack.c.l.b16 %v50
    %v70 = vunpack.c.l.b16 %v51
    %v71 = vunpack.c.l.b16 %v52
    %v72 = vunpack.c.l.b16 %v53
    %v73 = vpack.c.b16 %v70, %v69
    %v74 = vpack.c.b16 %v72, %v71
    %vm77 = vcmask 261120
    %v79 = vsel %vm77, %v58, 0
    %81 = vmatprep.subr.bf16.mxu0 0
    %82 = vmatpush1.bf16.msra.mxu0 %v73
    %83 = vmatprep.subr.bf16.mxu0 0
    %84 = vmatpush1.bf16.msra.mxu0 %v74
    %85 = vmatprep.subr.bf16.mxu0 0
    %86 = vmatpush1.bf16.msra.mxu0 0
    %87 = vmatprep.subr.bf16.mxu0 0
    %88 = vmatpush1.bf16.msra.mxu0 0
    %89 = vmatprep.subr.bf16.mxu0 0
    %90 = vmatpush1.bf16.msra.mxu0 0
    %91 = vmatprep.subr.bf16.mxu0 0
    %92 = vmatpush1.bf16.msra.mxu0 0
    %93 = vmatprep.subr.bf16.mxu0 0
    %94 = vmatpush1.bf16.msra.mxu0 0
    %95 = vmatprep.subr.bf16.mxu0 0
    %96 = vmatpush1.bf16.msra.mxu0 0
    %97 = vmatprep.subr.bf16.mxu0 0
    %98 = vmatpush1.bf16.msra.mxu0 0
    %99 = vmatprep.subr.bf16.mxu0 0
    %100 = vmatpush1.bf16.msra.mxu0 0
    %101 = vmatprep.subr.bf16.mxu0 0
    %102 = vmatpush1.bf16.msra.mxu0 0
    %103 = vmatprep.subr.bf16.mxu0 0
    %104 = vmatpush1.bf16.msra.mxu0 0
    %105 = vmatprep.subr.bf16.mxu0 0
    %106 = vmatpush1.bf16.msra.mxu0 0
    %107 = vmatprep.subr.bf16.mxu0 0
    %108 = vmatpush1.bf16.msra.mxu0 0
    %109 = vmatprep.subr.bf16.mxu0 0
    %110 = vmatpush1.bf16.msra.mxu0 0
    %111 = vmatprep.subr.bf16.mxu0 0
    %112 = vmatpush1.bf16.msra.mxu0 0
    %113 = vmatprep.mubr.bf16.mxu0 0
    %114 = vmatmul.mubr.bf16.gmra.mrb[0].mxu0 %v79
    %v115 = vpop.f32.mrb[0].mxu0
    %v116 = vadd.f32 %v63, %v115
    %v117 = vpop.f32.mrb[0].mxu0
    %v118 = vpop.f32.mrb[0].mxu0
    %v119 = vpop.f32.mrb[0].mxu0
    %120 = vdwg.mxu0
    %v122 = vrot.slane %v116, 1
    %v125 = vadd.f32 %v56, %v116
    %v126 = vadd.f32 %v57, %v122
    %v127 = vxor.u32 %v125, 2147483648
    %v128 = vxor.u32 %v126, 2147483648
    %v129 = vmul.f32 %v127, 1.442695
    %v130 = vpow.pop %v129
    %v131 = vmul.f32 %v128, 1.442695
    %v132 = vpow.pop %v131
    %v133 = vadd.f32 %v130, 1.0
    %v134 = vadd.f32 %v132, 1.0
    %v135 = vrcp.pop %v133
    %v136 = vmul.f32 1.0, %v135
    %v137 = vrcp.pop %v134
    %v138 = vmul.f32 1.0, %v137
    %139 = vrot.lane.b32.xlu0 %v116, 64
    %v140 = vpop.permute.xlu0 %139
    %141 = vrot.lane.b32.xlu0 %v122, 64
    %v142 = vpop.permute.xlu0 %141
    %v145 = vmul.f32 %v136, %v140
    %v146 = vmul.f32 %v138, %v142
    %149 = vrot.lane.b32.xlu0 %v145, 64
    %v150 = vpop.permute.xlu0 %149
    %151 = vrot.lane.b32.xlu0 %v146, 64
    %v152 = vpop.permute.xlu0 %151
    %v155 = vadd.f32 %v56, %v150
    %v156 = vadd.f32 %v57, %v152
    %v157 = vtanh.pop %v155
    %v158 = vtanh.pop %v156
    %v159 = vsub.f32 1.0, %v136
    %v160 = vsub.f32 1.0, %v138
    %163 = vrot.lane.b32.xlu0 %v157, 96
    %v164 = vpop.permute.xlu0 %163
    %165 = vrot.lane.b32.xlu0 %v158, 96
    %v166 = vpop.permute.xlu0 %165
    %v169 = vmul.f32 %v159, %v164
    %v170 = vmul.f32 %v160, %v166
    %v172 = vrot.slane %v55, 1
    %173 = vrot.lane.b32.xlu0 %v55, 32
    %v174 = vpop.permute.xlu0 %173
    %175 = vrot.lane.b32.xlu0 %v172, 32
    %v176 = vpop.permute.xlu0 %175
    %v179 = vmul.f32 %v136, %v174
    %v180 = vmul.f32 %v138, %v176
    %v181 = vadd.f32 %v169, %v179
    %v182 = vadd.f32 %v170, %v180
    %185 = vrot.lane.b32.xlu0 %v181, 96
    %v186 = vpop.permute.xlu0 %185
    %187 = vrot.lane.b32.xlu0 %v182, 96
    %v188 = vpop.permute.xlu0 %187
    %vm191 = vcmask 253952
    %192 = vst.msk [vmem:[#allocation8] sm:$0x1] %vm191, %v186
    %193 = vst.msk [vmem:[#allocation8 + $0x8] sm:$0x1] %vm191, %v188
    %v194 = vld [vmem:[#allocation3 + $0x1] sm:$0x1]
    %v195 = vld [vmem:[#allocation3 + $0x9] sm:$0x1]
    %v196 = vpack.c.bf16 %v181, %v181
    %v197 = vpack.c.bf16 %v182, %v182
    %v200 = vunpack.c.l.b16 %v196
    %v201 = vunpack.c.l.b16 %v197
    %v202 = vrot.slane %v201, 7
    %vm203 = vcmask 1041409
    %v204 = vsel %vm203, %v202, %v200
    %v205 = vpack.c.b16 %v204, %v204
    %206 = vrot.lane.b32.xlu0 %v205, 96
    %v207 = vpop.permute.xlu0 %206
    %v209 = vsel %vm77, %v207, 0
    %211 = vmatprep.subr.bf16.mxu0 0
    %212 = vmatpush1.bf16.msra.mxu0 %v73
    %213 = vmatprep.subr.bf16.mxu0 0
    %214 = vmatpush1.bf16.msra.mxu0 %v74
    %215 = vmatprep.subr.bf16.mxu0 0
    %216 = vmatpush1.bf16.msra.mxu0 0
    %217 = vmatprep.subr.bf16.mxu0 0
    %218 = vmatpush1.bf16.msra.mxu0 0
    %219 = vmatprep.subr.bf16.mxu0 0
    %220 = vmatpush1.bf16.msra.mxu0 0
    %221 = vmatprep.subr.bf16.mxu0 0
    %222 = vmatpush1.bf16.msra.mxu0 0
    %223 = vmatprep.subr.bf16.mxu0 0
    %224 = vmatpush1.bf16.msra.mxu0 0
    %225 = vmatprep.subr.bf16.mxu0 0
    %226 = vmatpush1.bf16.msra.mxu0 0
    %227 = vmatprep.subr.bf16.mxu0 0
    %228 = vmatpush1.bf16.msra.mxu0 0
    %229 = vmatprep.subr.bf16.mxu0 0
    %230 = vmatpush1.bf16.msra.mxu0 0
    %231 = vmatprep.subr.bf16.mxu0 0
    %232 = vmatpush1.bf16.msra.mxu0 0
    %233 = vmatprep.subr.bf16.mxu0 0
    %234 = vmatpush1.bf16.msra.mxu0 0
    %235 = vmatprep.subr.bf16.mxu0 0
    %236 = vmatpush1.bf16.msra.mxu0 0
    %237 = vmatprep.subr.bf16.mxu0 0
    %238 = vmatpush1.bf16.msra.mxu0 0
    %239 = vmatprep.subr.bf16.mxu0 0
    %240 = vmatpush1.bf16.msra.mxu0 0
    %241 = vmatprep.subr.bf16.mxu0 0
    %242 = vmatpush1.bf16.msra.mxu0 0
    %243 = vmatprep.mubr.bf16.mxu0 0
    %244 = vmatmul.mubr.bf16.gmra.mrb[0].mxu0 %v209
    %v245 = vpop.f32.mrb[0].mxu0
    %v246 = vadd.f32 %v63, %v245
    %v247 = vpop.f32.mrb[0].mxu0
    %v248 = vpop.f32.mrb[0].mxu0
    %v249 = vpop.f32.mrb[0].mxu0
    %250 = vdwg.mxu0
    %v252 = vrot.slane %v246, 1
    %v255 = vadd.f32 %v194, %v246
    %v256 = vadd.f32 %v195, %v252
    %v257 = vxor.u32 %v255, 2147483648
    %v258 = vxor.u32 %v256, 2147483648
    %v259 = vmul.f32 %v257, 1.442695
    %v260 = vpow.pop %v259
    %v261 = vmul.f32 %v258, 1.442695
    %v262 = vpow.pop %v261
    %v263 = vadd.f32 %v260, 1.0
    %v264 = vadd.f32 %v262, 1.0
    %v265 = vrcp.pop %v263
    %v266 = vmul.f32 1.0, %v265
    %v267 = vrcp.pop %v264
    %v268 = vmul.f32 1.0, %v267
    %269 = vrot.lane.b32.xlu0 %v246, 64
    %v270 = vpop.permute.xlu0 %269
    %271 = vrot.lane.b32.xlu0 %v252, 64
    %v272 = vpop.permute.xlu0 %271
    %v275 = vmul.f32 %v266, %v270
    %v276 = vmul.f32 %v268, %v272
    %279 = vrot.lane.b32.xlu0 %v275, 64
    %v280 = vpop.permute.xlu0 %279
    %281 = vrot.lane.b32.xlu0 %v276, 64
    %v282 = vpop.permute.xlu0 %281
    %v285 = vadd.f32 %v194, %v280
    %v286 = vadd.f32 %v195, %v282
    %v287 = vtanh.pop %v285
    %v288 = vtanh.pop %v286
    %v289 = vsub.f32 1.0, %v266
    %v290 = vsub.f32 1.0, %v268
    %293 = vrot.lane.b32.xlu0 %v287, 96
    %v294 = vpop.permute.xlu0 %293
    %295 = vrot.lane.b32.xlu0 %v288, 96
    %v296 = vpop.permute.xlu0 %295
    %v299 = vmul.f32 %v289, %v294
    %v300 = vmul.f32 %v290, %v296
    %v301 = vmul.f32 %v266, %v181
    %v302 = vmul.f32 %v268, %v182
    %v303 = vadd.f32 %v299, %v301
    %v304 = vadd.f32 %v300, %v302
    %307 = vrot.lane.b32.xlu0 %v303, 96
    %v308 = vpop.permute.xlu0 %307
    %309 = vrot.lane.b32.xlu0 %v304, 96
    %v310 = vpop.permute.xlu0 %309
    %313 = vst.msk [vmem:[#allocation8 + $0x1] sm:$0x1] %vm191, %v308
    %314 = vst.msk [vmem:[#allocation8 + $0x9] sm:$0x1] %vm191, %v310
    %v315 = vld [vmem:[#allocation3 + $0x2] sm:$0x1]
    %v316 = vld [vmem:[#allocation3 + $0xa] sm:$0x1]
    %v317 = vpack.c.bf16 %v303, %v303
    %v318 = vpack.c.bf16 %v304, %v304
    %v321 = vunpack.c.l.b16 %v317
    %v322 = vunpack.c.l.b16 %v318
    %v323 = vrot.slane %v322, 7
    %v324 = vsel %vm203, %v323, %v321
    %v325 = vpack.c.b16 %v324, %v324
    %326 = vrot.lane.b32.xlu0 %v325, 96
    %v327 = vpop.permute.xlu0 %326
    %v329 = vsel %vm77, %v327, 0
    %331 = vmatprep.subr.bf16.mxu0 0
    %332 = vmatpush1.bf16.msra.mxu0 %v73
    %333 = vmatprep.subr.bf16.mxu0 0
    %334 = vmatpush1.bf16.msra.mxu0 %v74
    %335 = vmatprep.subr.bf16.mxu0 0
    %336 = vmatpush1.bf16.msra.mxu0 0
    %337 = vmatprep.subr.bf16.mxu0 0
    %338 = vmatpush1.bf16.msra.mxu0 0
    %339 = vmatprep.subr.bf16.mxu0 0
    %340 = vmatpush1.bf16.msra.mxu0 0
    %341 = vmatprep.subr.bf16.mxu0 0
    %342 = vmatpush1.bf16.msra.mxu0 0
    %343 = vmatprep.subr.bf16.mxu0 0
    %344 = vmatpush1.bf16.msra.mxu0 0
    %345 = vmatprep.subr.bf16.mxu0 0
    %346 = vmatpush1.bf16.msra.mxu0 0
    %347 = vmatprep.subr.bf16.mxu0 0
    %348 = vmatpush1.bf16.msra.mxu0 0
    %349 = vmatprep.subr.bf16.mxu0 0
    %350 = vmatpush1.bf16.msra.mxu0 0
    %351 = vmatprep.subr.bf16.mxu0 0
    %352 = vmatpush1.bf16.msra.mxu0 0
    %353 = vmatprep.subr.bf16.mxu0 0
    %354 = vmatpush1.bf16.msra.mxu0 0
    %355 = vmatprep.subr.bf16.mxu0 0
    %356 = vmatpush1.bf16.msra.mxu0 0
    %357 = vmatprep.subr.bf16.mxu0 0
    %358 = vmatpush1.bf16.msra.mxu0 0
    %359 = vmatprep.subr.bf16.mxu0 0
    %360 = vmatpush1.bf16.msra.mxu0 0
    %361 = vmatprep.subr.bf16.mxu0 0
    %362 = vmatpush1.bf16.msra.mxu0 0
    %363 = vmatprep.mubr.bf16.mxu0 0
    %364 = vmatmul.mubr.bf16.gmra.mrb[0].mxu0 %v329
    %v365 = vpop.f32.mrb[0].mxu0
    %v366 = vadd.f32 %v63, %v365
    %v367 = vpop.f32.mrb[0].mxu0
    %v368 = vpop.f32.mrb[0].mxu0
    %v369 = vpop.f32.mrb[0].mxu0
    %370 = vdwg.mxu0
    %v372 = vrot.slane %v366, 1
    %v375 = vadd.f32 %v315, %v366
    %v376 = vadd.f32 %v316, %v372
    %v377 = vxor.u32 %v375, 2147483648
    %v378 = vxor.u32 %v376, 2147483648
    %v379 = vmul.f32 %v377, 1.442695
    %v380 = vpow.pop %v379
    %v381 = vmul.f32 %v378, 1.442695
    %v382 = vpow.pop %v381
    %v383 = vadd.f32 %v380, 1.0
    %v384 = vadd.f32 %v382, 1.0
    %v385 = vrcp.pop %v383
    %v386 = vmul.f32 1.0, %v385
    %v387 = vrcp.pop %v384
    %v388 = vmul.f32 1.0, %v387
    %389 = vrot.lane.b32.xlu0 %v366, 64
    %v390 = vpop.permute.xlu0 %389
    %391 = vrot.lane.b32.xlu0 %v372, 64
    %v392 = vpop.permute.xlu0 %391
    %v395 = vmul.f32 %v386, %v390
    %v396 = vmul.f32 %v388, %v392
    %399 = vrot.lane.b32.xlu0 %v395, 64
    %v400 = vpop.permute.xlu0 %399
    %401 = vrot.lane.b32.xlu0 %v396, 64
    %v402 = vpop.permute.xlu0 %401
    %v405 = vadd.f32 %v315, %v400
    %v406 = vadd.f32 %v316, %v402
    %v407 = vtanh.pop %v405
    %v408 = vtanh.pop %v406
    %v409 = vsub.f32 1.0, %v386
    %v410 = vsub.f32 1.0, %v388
    %413 = vrot.lane.b32.xlu0 %v407, 96
    %v414 = vpop.permute.xlu0 %413
    %415 = vrot.lane.b32.xlu0 %v408, 96
    %v416 = vpop.permute.xlu0 %415
    %v419 = vmul.f32 %v409, %v414
    %v420 = vmul.f32 %v410, %v416
    %v421 = vmul.f32 %v386, %v303
    %v422 = vmul.f32 %v388, %v304
    %v423 = vadd.f32 %v419, %v421
    %v424 = vadd.f32 %v420, %v422
    %427 = vrot.lane.b32.xlu0 %v423, 96
    %v428 = vpop.permute.xlu0 %427
    %429 = vrot.lane.b32.xlu0 %v424, 96
    %v430 = vpop.permute.xlu0 %429
    %433 = vst.msk [vmem:[#allocation8 + $0x2] sm:$0x1] %vm191, %v428
    %434 = vst.msk [vmem:[#allocation8 + $0xa] sm:$0x1] %vm191, %v430
    %v435 = vld [vmem:[#allocation3 + $0x3] sm:$0x1]
    %v436 = vld [vmem:[#allocation3 + $0xb] sm:$0x1]
    %v437 = vpack.c.bf16 %v423, %v423
    %v438 = vpack.c.bf16 %v424, %v424
    %v441 = vunpack.c.l.b16 %v437
    %v442 = vunpack.c.l.b16 %v438
    %v443 = vrot.slane %v442, 7
    %v444 = vsel %vm203, %v443, %v441
    %v445 = vpack.c.b16 %v444, %v444
    %446 = vrot.lane.b32.xlu0 %v445, 96
    %v447 = vpop.permute.xlu0 %446
    %v449 = vsel %vm77, %v447, 0
    %451 = vmatprep.subr.bf16.mxu0 0
    %452 = vmatpush1.bf16.msra.mxu0 %v73
    %453 = vmatprep.subr.bf16.mxu0 0
    %454 = vmatpush1.bf16.msra.mxu0 %v74
    %455 = vmatprep.subr.bf16.mxu0 0
    %456 = vmatpush1.bf16.msra.mxu0 0
    %457 = vmatprep.subr.bf16.mxu0 0
    %458 = vmatpush1.bf16.msra.mxu0 0
    %459 = vmatprep.subr.bf16.mxu0 0
    %460 = vmatpush1.bf16.msra.mxu0 0
    %461 = vmatprep.subr.bf16.mxu0 0
    %462 = vmatpush1.bf16.msra.mxu0 0
    %463 = vmatprep.subr.bf16.mxu0 0
    %464 = vmatpush1.bf16.msra.mxu0 0
    %465 = vmatprep.subr.bf16.mxu0 0
    %466 = vmatpush1.bf16.msra.mxu0 0
    %467 = vmatprep.subr.bf16.mxu0 0
    %468 = vmatpush1.bf16.msra.mxu0 0
    %469 = vmatprep.subr.bf16.mxu0 0
    %470 = vmatpush1.bf16.msra.mxu0 0
    %471 = vmatprep.subr.bf16.mxu0 0
    %472 = vmatpush1.bf16.msra.mxu0 0
    %473 = vmatprep.subr.bf16.mxu0 0
    %474 = vmatpush1.bf16.msra.mxu0 0
    %475 = vmatprep.subr.bf16.mxu0 0
    %476 = vmatpush1.bf16.msra.mxu0 0
    %477 = vmatprep.subr.bf16.mxu0 0
    %478 = vmatpush1.bf16.msra.mxu0 0
    %479 = vmatprep.subr.bf16.mxu0 0
    %480 = vmatpush1.bf16.msra.mxu0 0
    %481 = vmatprep.subr.bf16.mxu0 0
    %482 = vmatpush1.bf16.msra.mxu0 0
    %483 = vmatprep.mubr.bf16.mxu0 0
    %484 = vmatmul.mubr.bf16.gmra.mrb[0].mxu0 %v449
    %v485 = vpop.f32.mrb[0].mxu0
    %v486 = vadd.f32 %v63, %v485
    %v487 = vpop.f32.mrb[0].mxu0
    %v488 = vpop.f32.mrb[0].mxu0
    %v489 = vpop.f32.mrb[0].mxu0
    %490 = vdwg.mxu0
    %v492 = vrot.slane %v486, 1
    %v495 = vadd.f32 %v435, %v486
    %v496 = vadd.f32 %v436, %v492
    %v497 = vxor.u32 %v495, 2147483648
    %v498 = vxor.u32 %v496, 2147483648
    %v499 = vmul.f32 %v497, 1.442695
    %v500 = vpow.pop %v499
    %v501 = vmul.f32 %v498, 1.442695
    %v502 = vpow.pop %v501
    %v503 = vadd.f32 %v500, 1.0
    %v504 = vadd.f32 %v502, 1.0
    %v505 = vrcp.pop %v503
    %v506 = vmul.f32 1.0, %v505
    %v507 = vrcp.pop %v504
    %v508 = vmul.f32 1.0, %v507
    %509 = vrot.lane.b32.xlu0 %v486, 64
    %v510 = vpop.permute.xlu0 %509
    %511 = vrot.lane.b32.xlu0 %v492, 64
    %v512 = vpop.permute.xlu0 %511
    %v515 = vmul.f32 %v506, %v510
    %v516 = vmul.f32 %v508, %v512
    %519 = vrot.lane.b32.xlu0 %v515, 64
    %v520 = vpop.permute.xlu0 %519
    %521 = vrot.lane.b32.xlu0 %v516, 64
    %v522 = vpop.permute.xlu0 %521
    %v525 = vadd.f32 %v435, %v520
    %v526 = vadd.f32 %v436, %v522
    %v527 = vtanh.pop %v525
    %v528 = vtanh.pop %v526
    %v529 = vsub.f32 1.0, %v506
    %v530 = vsub.f32 1.0, %v508
    %533 = vrot.lane.b32.xlu0 %v527, 96
    %v534 = vpop.permute.xlu0 %533
    %535 = vrot.lane.b32.xlu0 %v528, 96
    %v536 = vpop.permute.xlu0 %535
    %v539 = vmul.f32 %v529, %v534
    %v540 = vmul.f32 %v530, %v536
    %v541 = vmul.f32 %v506, %v423
    %v542 = vmul.f32 %v508, %v424
    %v543 = vadd.f32 %v539, %v541
    %v544 = vadd.f32 %v540, %v542
    %547 = vrot.lane.b32.xlu0 %v543, 96
    %v548 = vpop.permute.xlu0 %547
    %549 = vrot.lane.b32.xlu0 %v544, 96
    %v550 = vpop.permute.xlu0 %549
    %553 = vst.msk [vmem:[#allocation8 + $0x3] sm:$0x1] %vm191, %v548
    %554 = vst.msk [vmem:[#allocation8 + $0xb] sm:$0x1] %vm191, %v550
    %v555 = vld [vmem:[#allocation3 + $0x4] sm:$0x1]
    %v556 = vld [vmem:[#allocation3 + $0xc] sm:$0x1]
    %v557 = vpack.c.bf16 %v543, %v543
    %v558 = vpack.c.bf16 %v544, %v544
    %v561 = vunpack.c.l.b16 %v557
    %v562 = vunpack.c.l.b16 %v558
    %v563 = vrot.slane %v562, 7
    %v564 = vsel %vm203, %v563, %v561
    %v565 = vpack.c.b16 %v564, %v564
    %566 = vrot.lane.b32.xlu0 %v565, 96
    %v567 = vpop.permute.xlu0 %566
    %v569 = vsel %vm77, %v567, 0
    %571 = vmatprep.subr.bf16.mxu0 0
    %572 = vmatpush1.bf16.msra.mxu0 %v73
    %573 = vmatprep.subr.bf16.mxu0 0
    %574 = vmatpush1.bf16.msra.mxu0 %v74
    %575 = vmatprep.subr.bf16.mxu0 0
    %576 = vmatpush1.bf16.msra.mxu0 0
    %577 = vmatprep.subr.bf16.mxu0 0
    %578 = vmatpush1.bf16.msra.mxu0 0
    %579 = vmatprep.subr.bf16.mxu0 0
    %580 = vmatpush1.bf16.msra.mxu0 0
    %581 = vmatprep.subr.bf16.mxu0 0
    %582 = vmatpush1.bf16.msra.mxu0 0
    %583 = vmatprep.subr.bf16.mxu0 0
    %584 = vmatpush1.bf16.msra.mxu0 0
    %585 = vmatprep.subr.bf16.mxu0 0
    %586 = vmatpush1.bf16.msra.mxu0 0
    %587 = vmatprep.subr.bf16.mxu0 0
    %588 = vmatpush1.bf16.msra.mxu0 0
    %589 = vmatprep.subr.bf16.mxu0 0
    %590 = vmatpush1.bf16.msra.mxu0 0
    %591 = vmatprep.subr.bf16.mxu0 0
    %592 = vmatpush1.bf16.msra.mxu0 0
    %593 = vmatprep.subr.bf16.mxu0 0
    %594 = vmatpush1.bf16.msra.mxu0 0
    %595 = vmatprep.subr.bf16.mxu0 0
    %596 = vmatpush1.bf16.msra.mxu0 0
    %597 = vmatprep.subr.bf16.mxu0 0
    %598 = vmatpush1.bf16.msra.mxu0 0
    %599 = vmatprep.subr.bf16.mxu0 0
    %600 = vmatpush1.bf16.msra.mxu0 0
    %601 = vmatprep.subr.bf16.mxu0 0
    %602 = vmatpush1.bf16.msra.mxu0 0
    %603 = vmatprep.mubr.bf16.mxu0 0
    %604 = vmatmul.mubr.bf16.gmra.mrb[0].mxu0 %v569
    %v605 = vpop.f32.mrb[0].mxu0
    %v606 = vadd.f32 %v63, %v605
    %v607 = vpop.f32.mrb[0].mxu0
    %v608 = vpop.f32.mrb[0].mxu0
    %v609 = vpop.f32.mrb[0].mxu0
    %610 = vdwg.mxu0
    %v612 = vrot.slane %v606, 1
    %v615 = vadd.f32 %v555, %v606
    %v616 = vadd.f32 %v556, %v612
    %v617 = vxor.u32 %v615, 2147483648
    %v618 = vxor.u32 %v616, 2147483648
    %v619 = vmul.f32 %v617, 1.442695
    %v620 = vpow.pop %v619
    %v621 = vmul.f32 %v618, 1.442695
    %v622 = vpow.pop %v621
    %v623 = vadd.f32 %v620, 1.0
    %v624 = vadd.f32 %v622, 1.0
    %v625 = vrcp.pop %v623
    %v626 = vmul.f32 1.0, %v625
    %v627 = vrcp.pop %v624
    %v628 = vmul.f32 1.0, %v627
    %629 = vrot.lane.b32.xlu0 %v606, 64
    %v630 = vpop.permute.xlu0 %629
    %631 = vrot.lane.b32.xlu0 %v612, 64
    %v632 = vpop.permute.xlu0 %631
    %v635 = vmul.f32 %v626, %v630
    %v636 = vmul.f32 %v628, %v632
    %639 = vrot.lane.b32.xlu0 %v635, 64
    %v640 = vpop.permute.xlu0 %639
    %641 = vrot.lane.b32.xlu0 %v636, 64
    %v642 = vpop.permute.xlu0 %641
    %v645 = vadd.f32 %v555, %v640
    %v646 = vadd.f32 %v556, %v642
    %v647 = vtanh.pop %v645
    %v648 = vtanh.pop %v646
    %v649 = vsub.f32 1.0, %v626
    %v650 = vsub.f32 1.0, %v628
    %653 = vrot.lane.b32.xlu0 %v647, 96
    %v654 = vpop.permute.xlu0 %653
    %655 = vrot.lane.b32.xlu0 %v648, 96
    %v656 = vpop.permute.xlu0 %655
    %v659 = vmul.f32 %v649, %v654
    %v660 = vmul.f32 %v650, %v656
    %v661 = vmul.f32 %v626, %v543
    %v662 = vmul.f32 %v628, %v544
    %v663 = vadd.f32 %v659, %v661
    %v664 = vadd.f32 %v660, %v662
    %667 = vrot.lane.b32.xlu0 %v663, 96
    %v668 = vpop.permute.xlu0 %667
    %669 = vrot.lane.b32.xlu0 %v664, 96
    %v670 = vpop.permute.xlu0 %669
    %673 = vst.msk [vmem:[#allocation8 + $0x4] sm:$0x1] %vm191, %v668
    %674 = vst.msk [vmem:[#allocation8 + $0xc] sm:$0x1] %vm191, %v670
    %v675 = vld [vmem:[#allocation3 + $0x5] sm:$0x1]
    %v676 = vld [vmem:[#allocation3 + $0xd] sm:$0x1]
    %v677 = vpack.c.bf16 %v663, %v663
    %v678 = vpack.c.bf16 %v664, %v664
    %v681 = vunpack.c.l.b16 %v677
    %v682 = vunpack.c.l.b16 %v678
    %v683 = vrot.slane %v682, 7
    %v684 = vsel %vm203, %v683, %v681
    %v685 = vpack.c.b16 %v684, %v684
    %686 = vrot.lane.b32.xlu0 %v685, 96
    %v687 = vpop.permute.xlu0 %686
    %v689 = vsel %vm77, %v687, 0
    %691 = vmatprep.subr.bf16.mxu0 0
    %692 = vmatpush1.bf16.msra.mxu0 %v73
    %693 = vmatprep.subr.bf16.mxu0 0
    %694 = vmatpush1.bf16.msra.mxu0 %v74
    %695 = vmatprep.subr.bf16.mxu0 0
    %696 = vmatpush1.bf16.msra.mxu0 0
    %697 = vmatprep.subr.bf16.mxu0 0
    %698 = vmatpush1.bf16.msra.mxu0 0
    %699 = vmatprep.subr.bf16.mxu0 0
    %700 = vmatpush1.bf16.msra.mxu0 0
    %701 = vmatprep.subr.bf16.mxu0 0
    %702 = vmatpush1.bf16.msra.mxu0 0
    %703 = vmatprep.subr.bf16.mxu0 0
    %704 = vmatpush1.bf16.msra.mxu0 0
    %705 = vmatprep.subr.bf16.mxu0 0
    %706 = vmatpush1.bf16.msra.mxu0 0
    %707 = vmatprep.subr.bf16.mxu0 0
    %708 = vmatpush1.bf16.msra.mxu0 0
    %709 = vmatprep.subr.bf16.mxu0 0
    %710 = vmatpush1.bf16.msra.mxu0 0
    %711 = vmatprep.subr.bf16.mxu0 0
    %712 = vmatpush1.bf16.msra.mxu0 0
    %713 = vmatprep.subr.bf16.mxu0 0
    %714 = vmatpush1.bf16.msra.mxu0 0
    %715 = vmatprep.subr.bf16.mxu0 0
    %716 = vmatpush1.bf16.msra.mxu0 0
    %717 = vmatprep.subr.bf16.mxu0 0
    %718 = vmatpush1.bf16.msra.mxu0 0
    %719 = vmatprep.subr.bf16.mxu0 0
    %720 = vmatpush1.bf16.msra.mxu0 0
    %721 = vmatprep.subr.bf16.mxu0 0
    %722 = vmatpush1.bf16.msra.mxu0 0
    %723 = vmatprep.mubr.bf16.mxu0 0
    %724 = vmatmul.mubr.bf16.gmra.mrb[0].mxu0 %v689
    %v725 = vpop.f32.mrb[0].mxu0
    %v726 = vadd.f32 %v63, %v725
    %v727 = vpop.f32.mrb[0].mxu0
    %v728 = vpop.f32.mrb[0].mxu0
    %v729 = vpop.f32.mrb[0].mxu0
    %730 = vdwg.mxu0
    %v732 = vrot.slane %v726, 1
    %v735 = vadd.f32 %v675, %v726
    %v736 = vadd.f32 %v676, %v732
    %v737 = vxor.u32 %v735, 2147483648
    %v738 = vxor.u32 %v736, 2147483648
    %v739 = vmul.f32 %v737, 1.442695
    %v740 = vpow.pop %v739
    %v741 = vmul.f32 %v738, 1.442695
    %v742 = vpow.pop %v741
    %v743 = vadd.f32 %v740, 1.0
    %v744 = vadd.f32 %v742, 1.0
    %v745 = vrcp.pop %v743
    %v746 = vmul.f32 1.0, %v745
    %v747 = vrcp.pop %v744
    %v748 = vmul.f32 1.0, %v747
    %749 = vrot.lane.b32.xlu0 %v726, 64
    %v750 = vpop.permute.xlu0 %749
    %751 = vrot.lane.b32.xlu0 %v732, 64
    %v752 = vpop.permute.xlu0 %751
    %v755 = vmul.f32 %v746, %v750
    %v756 = vmul.f32 %v748, %v752
    %759 = vrot.lane.b32.xlu0 %v755, 64
    %v760 = vpop.permute.xlu0 %759
    %761 = vrot.lane.b32.xlu0 %v756, 64
    %v762 = vpop.permute.xlu0 %761
    %v765 = vadd.f32 %v675, %v760
    %v766 = vadd.f32 %v676, %v762
    %v767 = vtanh.pop %v765
    %v768 = vtanh.pop %v766
    %v769 = vsub.f32 1.0, %v746
    %v770 = vsub.f32 1.0, %v748
    %773 = vrot.lane.b32.xlu0 %v767, 96
    %v774 = vpop.permute.xlu0 %773
    %775 = vrot.lane.b32.xlu0 %v768, 96
    %v776 = vpop.permute.xlu0 %775
    %v779 = vmul.f32 %v769, %v774
    %v780 = vmul.f32 %v770, %v776
    %v781 = vmul.f32 %v746, %v663
    %v782 = vmul.f32 %v748, %v664
    %v783 = vadd.f32 %v779, %v781
    %v784 = vadd.f32 %v780, %v782
    %787 = vrot.lane.b32.xlu0 %v783, 96
    %v788 = vpop.permute.xlu0 %787
    %789 = vrot.lane.b32.xlu0 %v784, 96
    %v790 = vpop.permute.xlu0 %789
    %793 = vst.msk [vmem:[#allocation8 + $0x5] sm:$0x1] %vm191, %v788
    %794 = vst.msk [vmem:[#allocation8 + $0xd] sm:$0x1] %vm191, %v790
    %v795 = vld [vmem:[#allocation3 + $0x6] sm:$0x1]
    %v796 = vld [vmem:[#allocation3 + $0xe] sm:$0x1]
    %v797 = vpack.c.bf16 %v783, %v783
    %v798 = vpack.c.bf16 %v784, %v784
    %v801 = vunpack.c.l.b16 %v797
    %v802 = vunpack.c.l.b16 %v798
    %v803 = vrot.slane %v802, 7
    %v804 = vsel %vm203, %v803, %v801
    %v805 = vpack.c.b16 %v804, %v804
    %806 = vrot.lane.b32.xlu0 %v805, 96
    %v807 = vpop.permute.xlu0 %806
    %v809 = vsel %vm77, %v807, 0
    %811 = vmatprep.subr.bf16.mxu0 0
    %812 = vmatpush1.bf16.msra.mxu0 %v73
    %813 = vmatprep.subr.bf16.mxu0 0
    %814 = vmatpush1.bf16.msra.mxu0 %v74
    %815 = vmatprep.subr.bf16.mxu0 0
    %816 = vmatpush1.bf16.msra.mxu0 0
    %817 = vmatprep.subr.bf16.mxu0 0
    %818 = vmatpush1.bf16.msra.mxu0 0
    %819 = vmatprep.subr.bf16.mxu0 0
    %820 = vmatpush1.bf16.msra.mxu0 0
    %821 = vmatprep.subr.bf16.mxu0 0
    %822 = vmatpush1.bf16.msra.mxu0 0
    %823 = vmatprep.subr.bf16.mxu0 0
    %824 = vmatpush1.bf16.msra.mxu0 0
    %825 = vmatprep.subr.bf16.mxu0 0
    %826 = vmatpush1.bf16.msra.mxu0 0
    %827 = vmatprep.subr.bf16.mxu0 0
    %828 = vmatpush1.bf16.msra.mxu0 0
    %829 = vmatprep.subr.bf16.mxu0 0
    %830 = vmatpush1.bf16.msra.mxu0 0
    %831 = vmatprep.subr.bf16.mxu0 0
    %832 = vmatpush1.bf16.msra.mxu0 0
    %833 = vmatprep.subr.bf16.mxu0 0
    %834 = vmatpush1.bf16.msra.mxu0 0
    %835 = vmatprep.subr.bf16.mxu0 0
    %836 = vmatpush1.bf16.msra.mxu0 0
    %837 = vmatprep.subr.bf16.mxu0 0
    %838 = vmatpush1.bf16.msra.mxu0 0
    %839 = vmatprep.subr.bf16.mxu0 0
    %840 = vmatpush1.bf16.msra.mxu0 0
    %841 = vmatprep.subr.bf16.mxu0 0
    %842 = vmatpush1.bf16.msra.mxu0 0
    %843 = vmatprep.mubr.bf16.mxu0 0
    %844 = vmatmul.mubr.bf16.gmra.mrb[0].mxu0 %v809
    %v845 = vpop.f32.mrb[0].mxu0
    %v846 = vadd.f32 %v63, %v845
    %v847 = vpop.f32.mrb[0].mxu0
    %v848 = vpop.f32.mrb[0].mxu0
    %v849 = vpop.f32.mrb[0].mxu0
    %850 = vdwg.mxu0
    %v852 = vrot.slane %v846, 1
    %v855 = vadd.f32 %v795, %v846
    %v856 = vadd.f32 %v796, %v852
    %v857 = vxor.u32 %v855, 2147483648
    %v858 = vxor.u32 %v856, 2147483648
    %v859 = vmul.f32 %v857, 1.442695
    %v860 = vpow.pop %v859
    %v861 = vmul.f32 %v858, 1.442695
    %v862 = vpow.pop %v861
    %v863 = vadd.f32 %v860, 1.0
    %v864 = vadd.f32 %v862, 1.0
    %v865 = vrcp.pop %v863
    %v866 = vmul.f32 1.0, %v865
    %v867 = vrcp.pop %v864
    %v868 = vmul.f32 1.0, %v867
    %869 = vrot.lane.b32.xlu0 %v846, 64
    %v870 = vpop.permute.xlu0 %869
    %871 = vrot.lane.b32.xlu0 %v852, 64
    %v872 = vpop.permute.xlu0 %871
    %v875 = vmul.f32 %v866, %v870
    %v876 = vmul.f32 %v868, %v872
    %879 = vrot.lane.b32.xlu0 %v875, 64
    %v880 = vpop.permute.xlu0 %879
    %881 = vrot.lane.b32.xlu0 %v876, 64
    %v882 = vpop.permute.xlu0 %881
    %v885 = vadd.f32 %v795, %v880
    %v886 = vadd.f32 %v796, %v882
    %v887 = vtanh.pop %v885
    %v888 = vtanh.pop %v886
    %v889 = vsub.f32 1.0, %v866
    %v890 = vsub.f32 1.0, %v868
    %893 = vrot.lane.b32.xlu0 %v887, 96
    %v894 = vpop.permute.xlu0 %893
    %895 = vrot.lane.b32.xlu0 %v888, 96
    %v896 = vpop.permute.xlu0 %895
    %v899 = vmul.f32 %v889, %v894
    %v900 = vmul.f32 %v890, %v896
    %v901 = vmul.f32 %v866, %v783
    %v902 = vmul.f32 %v868, %v784
    %v903 = vadd.f32 %v899, %v901
    %v904 = vadd.f32 %v900, %v902
    %907 = vrot.lane.b32.xlu0 %v903, 96
    %v908 = vpop.permute.xlu0 %907
    %909 = vrot.lane.b32.xlu0 %v904, 96
    %v910 = vpop.permute.xlu0 %909
    %913 = vst.msk [vmem:[#allocation8 + $0x6] sm:$0x1] %vm191, %v908
    %914 = vst.msk [vmem:[#allocation8 + $0xe] sm:$0x1] %vm191, %v910
    %v915 = vld [vmem:[#allocation3 + $0x7] sm:$0x1]
    %v916 = vld [vmem:[#allocation3 + $0xf] sm:$0x1]
    %v917 = vpack.c.bf16 %v903, %v903
    %v918 = vpack.c.bf16 %v904, %v904
    %v921 = vunpack.c.l.b16 %v917
    %v922 = vunpack.c.l.b16 %v918
    %v923 = vrot.slane %v922, 7
    %v924 = vsel %vm203, %v923, %v921
    %v925 = vpack.c.b16 %v924, %v924
    %926 = vrot.lane.b32.xlu0 %v925, 96
    %v927 = vpop.permute.xlu0 %926
    %v929 = vsel %vm77, %v927, 0
    %931 = vmatprep.subr.bf16.mxu0 0
    %932 = vmatpush1.bf16.msra.mxu0 %v73
    %933 = vmatprep.subr.bf16.mxu0 0
    %934 = vmatpush1.bf16.msra.mxu0 %v74
    %935 = vmatprep.subr.bf16.mxu0 0
    %936 = vmatpush1.bf16.msra.mxu0 0
    %937 = vmatprep.subr.bf16.mxu0 0
    %938 = vmatpush1.bf16.msra.mxu0 0
    %939 = vmatprep.subr.bf16.mxu0 0
    %940 = vmatpush1.bf16.msra.mxu0 0
    %941 = vmatprep.subr.bf16.mxu0 0
    %942 = vmatpush1.bf16.msra.mxu0 0
    %943 = vmatprep.subr.bf16.mxu0 0
    %944 = vmatpush1.bf16.msra.mxu0 0
    %945 = vmatprep.subr.bf16.mxu0 0
    %946 = vmatpush1.bf16.msra.mxu0 0
    %947 = vmatprep.subr.bf16.mxu0 0
    %948 = vmatpush1.bf16.msra.mxu0 0
    %949 = vmatprep.subr.bf16.mxu0 0
    %950 = vmatpush1.bf16.msra.mxu0 0
    %951 = vmatprep.subr.bf16.mxu0 0
    %952 = vmatpush1.bf16.msra.mxu0 0
    %953 = vmatprep.subr.bf16.mxu0 0
    %954 = vmatpush1.bf16.msra.mxu0 0
    %955 = vmatprep.subr.bf16.mxu0 0
    %956 = vmatpush1.bf16.msra.mxu0 0
    %957 = vmatprep.subr.bf16.mxu0 0
    %958 = vmatpush1.bf16.msra.mxu0 0
    %959 = vmatprep.subr.bf16.mxu0 0
    %960 = vmatpush1.bf16.msra.mxu0 0
    %961 = vmatprep.subr.bf16.mxu0 0
    %962 = vmatpush1.bf16.msra.mxu0 0
    %963 = vmatprep.mubr.bf16.mxu0 0
    %964 = vmatmul.mubr.bf16.gmra.mrb[0].mxu0 %v929
    %v965 = vpop.f32.mrb[0].mxu0
    %v966 = vadd.f32 %v63, %v965
    %v967 = vpop.f32.mrb[0].mxu0
    %v968 = vpop.f32.mrb[0].mxu0
    %v969 = vpop.f32.mrb[0].mxu0
    %970 = vdwg.mxu0
    %v972 = vrot.slane %v966, 1
    %v975 = vadd.f32 %v915, %v966
    %v976 = vadd.f32 %v916, %v972
    %v977 = vxor.u32 %v975, 2147483648
    %v978 = vxor.u32 %v976, 2147483648
    %v979 = vmul.f32 %v977, 1.442695
    %v980 = vpow.pop %v979
    %v981 = vmul.f32 %v978, 1.442695
    %v982 = vpow.pop %v981
    %v983 = vadd.f32 %v980, 1.0
    %v984 = vadd.f32 %v982, 1.0
    %v985 = vrcp.pop %v983
    %v986 = vmul.f32 1.0, %v985
    %v987 = vrcp.pop %v984
    %v988 = vmul.f32 1.0, %v987
    %989 = vrot.lane.b32.xlu0 %v966, 64
    %v990 = vpop.permute.xlu0 %989
    %991 = vrot.lane.b32.xlu0 %v972, 64
    %v992 = vpop.permute.xlu0 %991
    %v995 = vmul.f32 %v986, %v990
    %v996 = vmul.f32 %v988, %v992
    %999 = vrot.lane.b32.xlu0 %v995, 64
    %v1000 = vpop.permute.xlu0 %999
    %1001 = vrot.lane.b32.xlu0 %v996, 64
    %v1002 = vpop.permute.xlu0 %1001
    %v1005 = vadd.f32 %v915, %v1000
    %v1006 = vadd.f32 %v916, %v1002
    %v1007 = vtanh.pop %v1005
    %v1008 = vtanh.pop %v1006
    %v1009 = vsub.f32 1.0, %v986
    %v1010 = vsub.f32 1.0, %v988
    %1013 = vrot.lane.b32.xlu0 %v1007, 96
    %v1014 = vpop.permute.xlu0 %1013
    %1015 = vrot.lane.b32.xlu0 %v1008, 96
    %v1016 = vpop.permute.xlu0 %1015
    %v1019 = vmul.f32 %v1009, %v1014
    %v1020 = vmul.f32 %v1010, %v1016
    %v1021 = vmul.f32 %v986, %v903
    %v1022 = vmul.f32 %v988, %v904
    %v1023 = vadd.f32 %v1019, %v1021
    %v1024 = vadd.f32 %v1020, %v1022
    %1027 = vrot.lane.b32.xlu0 %v1023, 96
    %v1028 = vpop.permute.xlu0 %1027
    %1029 = vrot.lane.b32.xlu0 %v1024, 96
    %v1030 = vpop.permute.xlu0 %1029
    %1033 = vst.msk [vmem:[#allocation8 + $0x7] sm:$0x1] %vm191, %v1028
    %1034 = vst.msk [vmem:[#allocation8 + $0xf] sm:$0x1] %vm191, %v1030
    %v1035 = vrot.slane %v1024, 7
    %v1036 = vsel %vm203, %v1035, %v1023
    %1037 = vrot.lane.b32.xlu0 %v1036, 96
    %v1038 = vpop.permute.xlu0 %1037
    %vm1040 = vcmask 254976
    %1041 = vst.msk [vmem:[#allocation2] sm:$0x3] %vm1040, %v1038
    // Predicated region
    $region26: #{tpu_custom_call.1} parent=1 // pred_check
      _
    $region27: #{tpu_custom_call.1} parent=1 // pred_check_branch
      %1043 = sbr.rel (0) target = $region29
    $region28: #{tpu_custom_call.1} parent=1 // pred_region
      %s1045 = ssub.s32 256, 256
      %1046 = vsyncadd [#allocation5], %s1045
      %s1047 = sshll.u32 [#allocation8], 4
      %s1048 = int_to_ptr.vmem [resolvable:$true] %s1047
      %1053 = dma.vmem_to_hbm [thread:$0]  %s1048, 256, %s3, [#allocation5], 128, 128, 8
    $region29: #{tpu_custom_call.1} parent=1 // pred_fallthru
      _
    // Predicated region
    $region30: #{tpu_custom_call.1} parent=1 // pred_check
      _
    $region31: #{tpu_custom_call.1} parent=1 // pred_check_branch
      %1055 = sbr.rel (0) target = $region33
    $region32: #{tpu_custom_call.1} parent=1 // pred_region
      %1056 = dma.done [#allocation5], 256
    $region33: #{tpu_custom_call.1} parent=1 // pred_fallthru
      _
    %1057 = vsyncpa [#allocation4], 1
    %1058 = vsyncpa [#allocation7], 1
    %1059 = vsyncpa [#allocation5], 1

</llo_original>
